<compile_context>
chip_gen: v6e
topology: v6e:2x2x1
jax: 0.10.0
libtpu: 0.0.40
codegen_flags: <defaults>
</compile_context>

<pallas_src>
import jax
import jax.numpy as jnp
import numpy as np
from jax.experimental import pallas as pl
from jax.experimental.pallas import tpu as pltpu

IN_CH = 26
OUT_CH = 28
KSIZE = 17
PAD = 8              # "same" padding for kernel_size=17, stride=1
EPS = 1e-5           # PyTorch BatchNorm1d default
CIN_PAD = 32         # input channels zero-padded to a sublane-tile multiple

# TODO(synk): PyTorch training-mode BatchNorm1d also updates running_mean /
# running_var module buffers; only the forward activations are produced here.


def fused_conv_bn_kernel(x_ref, w_ref, b_ref, g_ref, beta_ref,
                         x1_ref, x2_ref, xcol_ref):
    """Fused Conv1d + bias + training-mode BatchNorm1d, NCL layout throughout.

    x_ref    : (N, CIN_PAD, L)          input, channels zero-padded to 32
    w_ref    : (OUT_CH, KSIZE*CIN_PAD)  im2col weight matrix (row k*32 + c)
    b_ref    : (OUT_CH, 1)              conv bias
    g_ref    : (OUT_CH, 1)              BN gamma
    beta_ref : (OUT_CH, 1)              BN beta
    x1_ref   : (N, OUT_CH, L)           conv output
    x2_ref   : (N, OUT_CH, L)           batch-normalized output
    xcol_ref : (KSIZE*CIN_PAD, N*L)     VMEM scratch for the im2col operand
    """
    N, _, L = x_ref.shape
    total = N * L

    # All batch elements side-by-side on the lane axis: (CIN_PAD, N*L).
    x_all = jnp.concatenate([x_ref[n] for n in range(N)], axis=1)

    # Lane position within each length-L segment (built once, reused 16x).
    pos = jax.lax.broadcasted_iota(jnp.int32, (1, total), 1) % L

    # im2col: each tap k is a circular roll (XLU) + zero-mask of the wrapped
    # padding region, written at a sublane-tile-aligned scratch offset.
    for k in range(KSIZE):
        d = k - PAD                                   # shift in [-8, 8]
        if d == 0:
            xk = x_all
        else:
            rolled = pltpu.roll(x_all, (-d) % total, 1)
            if d > 0:
                xk = jnp.where(pos < (L - d), rolled, 0.0)
            else:
                xk = jnp.where(pos >= (-d), rolled, 0.0)
        xcol_ref[k * CIN_PAD:(k + 1) * CIN_PAD, :] = xk

    # One deep matmul for the whole batch:
    # (28, 544) @ (544, N*L) -> (28, N*L), fully lane-dense result.
    y = jnp.dot(w_ref[...], xcol_ref[...],
                preferred_element_type=jnp.float32) + b_ref[...]

    # Single-pass batch statistics over the (N*L) axis while y is live.
    # NOTE: sumsq/cnt - mean^2 can cancel when |mean| >> std; acceptable at
    # the 1e-3 tolerance used here (clamped at 0 for safety).
    cnt = jnp.float32(total)
    mean = jnp.sum(y, axis=1, keepdims=True) / cnt                      # (28,1)
    var = jnp.maximum(jnp.sum(y * y, axis=1, keepdims=True) / cnt
                      - mean * mean, 0.0)                               # biased
    scale = jax.lax.rsqrt(var + EPS) * g_ref[...]   # fold gamma into scale
    shift = beta_ref[...] - mean * scale            # fold beta/mean into shift
    x2 = y * scale + shift                          # one broadcast, whole batch

    # Lane-aligned (L is a multiple of 128) slices back into NCL outputs.
    for n in range(N):
        x1_ref[n] = y[:, n * L:(n + 1) * L]
        x2_ref[n] = x2[:, n * L:(n + 1) * L]


def mm_forward(x_ncl, conv_w, conv_b, bn_gamma, bn_beta):
    """x_ncl: (N, IN_CH, L) float32 -> (x1, x2) each (N, OUT_CH, L)."""
    N, C, L = x_ncl.shape
    assert C == IN_CH

    # Zero-pad channels 26 -> 32 so every im2col block is sublane-tile aligned.
    xp = jnp.pad(x_ncl, ((0, 0), (0, CIN_PAD - IN_CH), (0, 0)))

    # Weight as the exact matmul operand: w2d[o, k*32 + c] = conv_w[o, c, k],
    # zero for the padded channels (so padded input rows contribute nothing).
    w2d = jnp.transpose(conv_w, (0, 2, 1))                        # (Cout, K, Cin)
    w2d = jnp.pad(w2d, ((0, 0), (0, 0), (0, CIN_PAD - IN_CH)))    # (Cout, K, 32)
    w2d = w2d.reshape(OUT_CH, KSIZE * CIN_PAD)
    b2 = conv_b.reshape(OUT_CH, 1)
    g2 = bn_gamma.reshape(OUT_CH, 1)
    bt2 = bn_beta.reshape(OUT_CH, 1)

    x1, x2 = pl.pallas_call(
        fused_conv_bn_kernel,
        out_shape=(jax.ShapeDtypeStruct((N, OUT_CH, L), jnp.float32),
                   jax.ShapeDtypeStruct((N, OUT_CH, L), jnp.float32)),
        grid=(1,),
        in_specs=[
            pl.BlockSpec((N, CIN_PAD, L), lambda i: (0, 0, 0)),
            pl.BlockSpec((OUT_CH, KSIZE * CIN_PAD), lambda i: (0, 0)),
            pl.BlockSpec((OUT_CH, 1), lambda i: (0, 0)),
            pl.BlockSpec((OUT_CH, 1), lambda i: (0, 0)),
            pl.BlockSpec((OUT_CH, 1), lambda i: (0, 0)),
        ],
        out_specs=(pl.BlockSpec((N, OUT_CH, L), lambda i: (0, 0, 0)),
                   pl.BlockSpec((N, OUT_CH, L), lambda i: (0, 0, 0))),
        scratch_shapes=[pltpu.VMEM((KSIZE * CIN_PAD, N * L), jnp.float32)],
        compiler_params=pltpu.CompilerParams(
            dimension_semantics=("arbitrary",)),
    )(xp, w2d, b2, g2, bt2)
    return x1, x2


def _reference(x_ncl, conv_w, conv_b, bn_gamma, bn_beta):
    """Pure-JAX reference for correctness check."""
    x1 = jax.lax.conv_general_dilated(
        x_ncl, conv_w, window_strides=(1,), padding=[(PAD, PAD)],
        dimension_numbers=("NCH", "OIH", "NCH"))
    x1 = x1 + conv_b[None, :, None]
    mean = jnp.mean(x1, axis=(0, 2), keepdims=True)
    var = jnp.mean((x1 - mean) ** 2, axis=(0, 2), keepdims=True)
    x2 = (x1 - mean) * jax.lax.rsqrt(var + EPS)
    x2 = x2 * bn_gamma[None, :, None] + bn_beta[None, :, None]
    return x1, x2


if __name__ == "__main__":
    key = jax.random.PRNGKey(0)
    k_x, k_w, k_b, k_bt = jax.random.split(key, 4)

    # small, conv-consistent shapes: batch=2, in_channels=26, length=128
    # (length chosen lane-aligned so conv/BN stores are fully lane-dense)
    N, L = 2, 128
    x = jax.random.normal(k_x, (N, IN_CH, L), dtype=jnp.float32)

    # deterministic parameter init (shapes match nn.Conv1d / nn.BatchNorm1d)
    conv_w = 0.1 * jax.random.normal(k_w, (OUT_CH, IN_CH, KSIZE), dtype=jnp.float32)
    conv_b = 0.1 * jax.random.normal(k_b, (OUT_CH,), dtype=jnp.float32)
    bn_gamma = jnp.ones((OUT_CH,), dtype=jnp.float32)     # BatchNorm default weight
    bn_beta = 0.1 * jax.random.normal(k_bt, (OUT_CH,), dtype=jnp.float32)

    x1, x2 = jax.jit(mm_forward)(x, conv_w, conv_b, bn_gamma, bn_beta)
    jax.block_until_ready((x1, x2))

    r1, r2 = _reference(x, conv_w, conv_b, bn_gamma, bn_beta)
    np.testing.assert_allclose(np.asarray(x1), np.asarray(r1), rtol=1e-3, atol=1e-3)
    np.testing.assert_allclose(np.asarray(x2), np.asarray(r2), rtol=1e-3, atol=1e-3)

    print("KERNEL_OK")
</pallas_src>

<mosaic_0001>
module attributes {stable_mosaic.version = 11 : i64} {
  func.func @fused_conv_bn_kernel(%arg0: i32, %arg1: memref<2x32x128xf32, #tpu.memory_space<vmem>>, %arg2: memref<28x544xf32, #tpu.memory_space<vmem>>, %arg3: memref<28x1xf32, #tpu.memory_space<vmem>>, %arg4: memref<28x1xf32, #tpu.memory_space<vmem>>, %arg5: memref<28x1xf32, #tpu.memory_space<vmem>>, %arg6: memref<2x28x128xf32, #tpu.memory_space<vmem>>, %arg7: memref<2x28x128xf32, #tpu.memory_space<vmem>>, %arg8: memref<544x256xf32, #tpu.memory_space<vmem>>) attributes {dimension_semantics = [#tpu.dimension_semantics<arbitrary>], iteration_bounds = array<i64: 1>, scalar_prefetch = 0 : i64, scratch_operands = 1 : i64, tpu.core_type = #tpu.core_type<tc>, window_params = [{pipeline_mode = #tpu.pipeline_mode<synchronous>, transform_indices = @transform_0, window_bounds = array<i64: 2, 32, 128>}, {pipeline_mode = #tpu.pipeline_mode<synchronous>, transform_indices = @transform_1, window_bounds = array<i64: 28, 544>}, {pipeline_mode = #tpu.pipeline_mode<synchronous>, transform_indices = @transform_2, window_bounds = array<i64: 28, 1>}, {pipeline_mode = #tpu.pipeline_mode<synchronous>, transform_indices = @transform_3, window_bounds = array<i64: 28, 1>}, {pipeline_mode = #tpu.pipeline_mode<synchronous>, transform_indices = @transform_4, window_bounds = array<i64: 28, 1>}, {pipeline_mode = #tpu.pipeline_mode<synchronous>, transform_indices = @transform_5, window_bounds = array<i64: 2, 28, 128>}, {pipeline_mode = #tpu.pipeline_mode<synchronous>, transform_indices = @transform_6, window_bounds = array<i64: 2, 28, 128>}]} {
    %c0 = arith.constant 0 : index
    %c0_0 = arith.constant 0 : index
    %c0_1 = arith.constant 0 : index
    %0 = vector.load %arg1[%c0, %c0_0, %c0_1] : memref<2x32x128xf32, #tpu.memory_space<vmem>>, vector<1x32x128xf32>
    %1 = vector.shape_cast %0 : vector<1x32x128xf32> to vector<32x128xf32>
    %c1 = arith.constant 1 : index
    %c0_2 = arith.constant 0 : index
    %c0_3 = arith.constant 0 : index
    %2 = vector.load %arg1[%c1, %c0_2, %c0_3] : memref<2x32x128xf32, #tpu.memory_space<vmem>>, vector<1x32x128xf32>
    %3 = vector.shape_cast %2 : vector<1x32x128xf32> to vector<32x128xf32>
    %4 = tpu.concatenate %1, %3 in 1 : vector<32x128xf32>, vector<32x128xf32> -> vector<32x256xf32>
    %5 = tpu.iota {dimensions = array<i32: 1>} : vector<1x256xi32>
    %c128_i32 = arith.constant 128 : i32
    %c0_i32 = arith.constant 0 : i32
    %6 = arith.cmpi eq, %c128_i32, %c0_i32 : i32
    %c1_i32 = arith.constant 1 : i32
    %7 = arith.select %6, %c1_i32, %c128_i32 : i32
    %8 = vector.broadcast %7 : i32 to vector<1x256xi32>
    %9 = arith.remsi %5, %8 : vector<1x256xi32>
    %c0_i32_4 = arith.constant 0 : i32
    %10 = vector.broadcast %c0_i32_4 : i32 to vector<1x256xi32>
    %11 = arith.cmpi ne, %9, %10 : vector<1x256xi32>
    %c0_i32_5 = arith.constant 0 : i32
    %12 = vector.broadcast %c0_i32_5 : i32 to vector<1x256xi32>
    %13 = arith.cmpi slt, %9, %12 : vector<1x256xi32>
    %c0_i32_6 = arith.constant 0 : i32
    %14 = arith.cmpi slt, %7, %c0_i32_6 : i32
    %15 = vector.broadcast %14 : i1 to vector<1x256xi1>
    %16 = vector.broadcast %15 : vector<1x256xi1> to vector<1x256xi1>
    %17 = arith.xori %13, %16 : vector<1x256xi1>
    %18 = arith.andi %17, %11 : vector<1x256xi1>
    %19 = vector.broadcast %7 : i32 to vector<1x256xi32>
    %20 = arith.addi %9, %19 : vector<1x256xi32>
    %21 = arith.select %18, %20, %9 : vector<1x256xi1>, vector<1x256xi32>
    %c8_i32 = arith.constant 8 : i32
    %22 = tpu.dynamic_rotate %4 by %c8_i32 dim 1 : vector<32x256xf32>, i32 -> vector<32x256xf32>
    %c8_i32_7 = arith.constant 8 : i32
    %23 = vector.broadcast %c8_i32_7 : i32 to vector<1x256xi32>
    %24 = arith.cmpi sge, %21, %23 : vector<1x256xi32>
    %cst = arith.constant 0.000000e+00 : f32
    %25 = vector.shape_cast %24 : vector<1x256xi1> to vector<1x256xi1>
    %26 = vector.broadcast %25 : vector<1x256xi1> to vector<32x256xi1>
    %27 = vector.broadcast %cst : f32 to vector<32x256xf32>
    %28 = arith.select %26, %22, %27 : vector<32x256xi1>, vector<32x256xf32>
    %c0_8 = arith.constant 0 : index
    %c0_9 = arith.constant 0 : index
    %29 = vector.load %arg8[%c0_8, %c0_9] : memref<544x256xf32, #tpu.memory_space<vmem>>, vector<32x256xf32>
    tpu.vector_store %arg8[%c0_8, %c0_9], %28 {strides = array<i32>} : memref<544x256xf32, #tpu.memory_space<vmem>>, vector<32x256xf32>,
    %c7_i32 = arith.constant 7 : i32
    %30 = tpu.dynamic_rotate %4 by %c7_i32 dim 1 : vector<32x256xf32>, i32 -> vector<32x256xf32>
    %c7_i32_10 = arith.constant 7 : i32
    %31 = vector.broadcast %c7_i32_10 : i32 to vector<1x256xi32>
    %32 = arith.cmpi sge, %21, %31 : vector<1x256xi32>
    %cst_11 = arith.constant 0.000000e+00 : f32
    %33 = vector.shape_cast %32 : vector<1x256xi1> to vector<1x256xi1>
    %34 = vector.broadcast %33 : vector<1x256xi1> to vector<32x256xi1>
    %35 = vector.broadcast %cst_11 : f32 to vector<32x256xf32>
    %36 = arith.select %34, %30, %35 : vector<32x256xi1>, vector<32x256xf32>
    %c32 = arith.constant 32 : index
    %c0_12 = arith.constant 0 : index
    %37 = vector.load %arg8[%c32, %c0_12] : memref<544x256xf32, #tpu.memory_space<vmem>>, vector<32x256xf32>
    tpu.vector_store %arg8[%c32, %c0_12], %36 {strides = array<i32>} : memref<544x256xf32, #tpu.memory_space<vmem>>, vector<32x256xf32>,
    %c6_i32 = arith.constant 6 : i32
    %38 = tpu.dynamic_rotate %4 by %c6_i32 dim 1 : vector<32x256xf32>, i32 -> vector<32x256xf32>
    %c6_i32_13 = arith.constant 6 : i32
    %39 = vector.broadcast %c6_i32_13 : i32 to vector<1x256xi32>
    %40 = arith.cmpi sge, %21, %39 : vector<1x256xi32>
    %cst_14 = arith.constant 0.000000e+00 : f32
    %41 = vector.shape_cast %40 : vector<1x256xi1> to vector<1x256xi1>
    %42 = vector.broadcast %41 : vector<1x256xi1> to vector<32x256xi1>
    %43 = vector.broadcast %cst_14 : f32 to vector<32x256xf32>
    %44 = arith.select %42, %38, %43 : vector<32x256xi1>, vector<32x256xf32>
    %c64 = arith.constant 64 : index
    %c0_15 = arith.constant 0 : index
    %45 = vector.load %arg8[%c64, %c0_15] : memref<544x256xf32, #tpu.memory_space<vmem>>, vector<32x256xf32>
    tpu.vector_store %arg8[%c64, %c0_15], %44 {strides = array<i32>} : memref<544x256xf32, #tpu.memory_space<vmem>>, vector<32x256xf32>,
    %c5_i32 = arith.constant 5 : i32
    %46 = tpu.dynamic_rotate %4 by %c5_i32 dim 1 : vector<32x256xf32>, i32 -> vector<32x256xf32>
    %c5_i32_16 = arith.constant 5 : i32
    %47 = vector.broadcast %c5_i32_16 : i32 to vector<1x256xi32>
    %48 = arith.cmpi sge, %21, %47 : vector<1x256xi32>
    %cst_17 = arith.constant 0.000000e+00 : f32
    %49 = vector.shape_cast %48 : vector<1x256xi1> to vector<1x256xi1>
    %50 = vector.broadcast %49 : vector<1x256xi1> to vector<32x256xi1>
    %51 = vector.broadcast %cst_17 : f32 to vector<32x256xf32>
    %52 = arith.select %50, %46, %51 : vector<32x256xi1>, vector<32x256xf32>
    %c96 = arith.constant 96 : index
    %c0_18 = arith.constant 0 : index
    %53 = vector.load %arg8[%c96, %c0_18] : memref<544x256xf32, #tpu.memory_space<vmem>>, vector<32x256xf32>
    tpu.vector_store %arg8[%c96, %c0_18], %52 {strides = array<i32>} : memref<544x256xf32, #tpu.memory_space<vmem>>, vector<32x256xf32>,
    %c4_i32 = arith.constant 4 : i32
    %54 = tpu.dynamic_rotate %4 by %c4_i32 dim 1 : vector<32x256xf32>, i32 -> vector<32x256xf32>
    %c4_i32_19 = arith.constant 4 : i32
    %55 = vector.broadcast %c4_i32_19 : i32 to vector<1x256xi32>
    %56 = arith.cmpi sge, %21, %55 : vector<1x256xi32>
    %cst_20 = arith.constant 0.000000e+00 : f32
    %57 = vector.shape_cast %56 : vector<1x256xi1> to vector<1x256xi1>
    %58 = vector.broadcast %57 : vector<1x256xi1> to vector<32x256xi1>
    %59 = vector.broadcast %cst_20 : f32 to vector<32x256xf32>
    %60 = arith.select %58, %54, %59 : vector<32x256xi1>, vector<32x256xf32>
    %c128 = arith.constant 128 : index
    %c0_21 = arith.constant 0 : index
    %61 = vector.load %arg8[%c128, %c0_21] : memref<544x256xf32, #tpu.memory_space<vmem>>, vector<32x256xf32>
    tpu.vector_store %arg8[%c128, %c0_21], %60 {strides = array<i32>} : memref<544x256xf32, #tpu.memory_space<vmem>>, vector<32x256xf32>,
    %c3_i32 = arith.constant 3 : i32
    %62 = tpu.dynamic_rotate %4 by %c3_i32 dim 1 : vector<32x256xf32>, i32 -> vector<32x256xf32>
    %c3_i32_22 = arith.constant 3 : i32
    %63 = vector.broadcast %c3_i32_22 : i32 to vector<1x256xi32>
    %64 = arith.cmpi sge, %21, %63 : vector<1x256xi32>
    %cst_23 = arith.constant 0.000000e+00 : f32
    %65 = vector.shape_cast %64 : vector<1x256xi1> to vector<1x256xi1>
    %66 = vector.broadcast %65 : vector<1x256xi1> to vector<32x256xi1>
    %67 = vector.broadcast %cst_23 : f32 to vector<32x256xf32>
    %68 = arith.select %66, %62, %67 : vector<32x256xi1>, vector<32x256xf32>
    %c160 = arith.constant 160 : index
    %c0_24 = arith.constant 0 : index
    %69 = vector.load %arg8[%c160, %c0_24] : memref<544x256xf32, #tpu.memory_space<vmem>>, vector<32x256xf32>
    tpu.vector_store %arg8[%c160, %c0_24], %68 {strides = array<i32>} : memref<544x256xf32, #tpu.memory_space<vmem>>, vector<32x256xf32>,
    %c2_i32 = arith.constant 2 : i32
    %70 = tpu.dynamic_rotate %4 by %c2_i32 dim 1 : vector<32x256xf32>, i32 -> vector<32x256xf32>
    %c2_i32_25 = arith.constant 2 : i32
    %71 = vector.broadcast %c2_i32_25 : i32 to vector<1x256xi32>
    %72 = arith.cmpi sge, %21, %71 : vector<1x256xi32>
    %cst_26 = arith.constant 0.000000e+00 : f32
    %73 = vector.shape_cast %72 : vector<1x256xi1> to vector<1x256xi1>
    %74 = vector.broadcast %73 : vector<1x256xi1> to vector<32x256xi1>
    %75 = vector.broadcast %cst_26 : f32 to vector<32x256xf32>
    %76 = arith.select %74, %70, %75 : vector<32x256xi1>, vector<32x256xf32>
    %c192 = arith.constant 192 : index
    %c0_27 = arith.constant 0 : index
    %77 = vector.load %arg8[%c192, %c0_27] : memref<544x256xf32, #tpu.memory_space<vmem>>, vector<32x256xf32>
    tpu.vector_store %arg8[%c192, %c0_27], %76 {strides = array<i32>} : memref<544x256xf32, #tpu.memory_space<vmem>>, vector<32x256xf32>,
    %c1_i32_28 = arith.constant 1 : i32
    %78 = tpu.dynamic_rotate %4 by %c1_i32_28 dim 1 : vector<32x256xf32>, i32 -> vector<32x256xf32>
    %c1_i32_29 = arith.constant 1 : i32
    %79 = vector.broadcast %c1_i32_29 : i32 to vector<1x256xi32>
    %80 = arith.cmpi sge, %21, %79 : vector<1x256xi32>
    %cst_30 = arith.constant 0.000000e+00 : f32
    %81 = vector.shape_cast %80 : vector<1x256xi1> to vector<1x256xi1>
    %82 = vector.broadcast %81 : vector<1x256xi1> to vector<32x256xi1>
    %83 = vector.broadcast %cst_30 : f32 to vector<32x256xf32>
    %84 = arith.select %82, %78, %83 : vector<32x256xi1>, vector<32x256xf32>
    %c224 = arith.constant 224 : index
    %c0_31 = arith.constant 0 : index
    %85 = vector.load %arg8[%c224, %c0_31] : memref<544x256xf32, #tpu.memory_space<vmem>>, vector<32x256xf32>
    tpu.vector_store %arg8[%c224, %c0_31], %84 {strides = array<i32>} : memref<544x256xf32, #tpu.memory_space<vmem>>, vector<32x256xf32>,
    %c256 = arith.constant 256 : index
    %c0_32 = arith.constant 0 : index
    %86 = vector.load %arg8[%c256, %c0_32] : memref<544x256xf32, #tpu.memory_space<vmem>>, vector<32x256xf32>
    tpu.vector_store %arg8[%c256, %c0_32], %4 {strides = array<i32>} : memref<544x256xf32, #tpu.memory_space<vmem>>, vector<32x256xf32>,
    %c255_i32 = arith.constant 255 : i32
    %87 = tpu.dynamic_rotate %4 by %c255_i32 dim 1 : vector<32x256xf32>, i32 -> vector<32x256xf32>
    %c127_i32 = arith.constant 127 : i32
    %88 = vector.broadcast %c127_i32 : i32 to vector<1x256xi32>
    %89 = arith.cmpi slt, %21, %88 : vector<1x256xi32>
    %cst_33 = arith.constant 0.000000e+00 : f32
    %90 = vector.shape_cast %89 : vector<1x256xi1> to vector<1x256xi1>
    %91 = vector.broadcast %90 : vector<1x256xi1> to vector<32x256xi1>
    %92 = vector.broadcast %cst_33 : f32 to vector<32x256xf32>
    %93 = arith.select %91, %87, %92 : vector<32x256xi1>, vector<32x256xf32>
    %c288 = arith.constant 288 : index
    %c0_34 = arith.constant 0 : index
    %94 = vector.load %arg8[%c288, %c0_34] : memref<544x256xf32, #tpu.memory_space<vmem>>, vector<32x256xf32>
    tpu.vector_store %arg8[%c288, %c0_34], %93 {strides = array<i32>} : memref<544x256xf32, #tpu.memory_space<vmem>>, vector<32x256xf32>,
    %c254_i32 = arith.constant 254 : i32
    %95 = tpu.dynamic_rotate %4 by %c254_i32 dim 1 : vector<32x256xf32>, i32 -> vector<32x256xf32>
    %c126_i32 = arith.constant 126 : i32
    %96 = vector.broadcast %c126_i32 : i32 to vector<1x256xi32>
    %97 = arith.cmpi slt, %21, %96 : vector<1x256xi32>
    %cst_35 = arith.constant 0.000000e+00 : f32
    %98 = vector.shape_cast %97 : vector<1x256xi1> to vector<1x256xi1>
    %99 = vector.broadcast %98 : vector<1x256xi1> to vector<32x256xi1>
    %100 = vector.broadcast %cst_35 : f32 to vector<32x256xf32>
    %101 = arith.select %99, %95, %100 : vector<32x256xi1>, vector<32x256xf32>
    %c320 = arith.constant 320 : index
    %c0_36 = arith.constant 0 : index
    %102 = vector.load %arg8[%c320, %c0_36] : memref<544x256xf32, #tpu.memory_space<vmem>>, vector<32x256xf32>
    tpu.vector_store %arg8[%c320, %c0_36], %101 {strides = array<i32>} : memref<544x256xf32, #tpu.memory_space<vmem>>, vector<32x256xf32>,
    %c253_i32 = arith.constant 253 : i32
    %103 = tpu.dynamic_rotate %4 by %c253_i32 dim 1 : vector<32x256xf32>, i32 -> vector<32x256xf32>
    %c125_i32 = arith.constant 125 : i32
    %104 = vector.broadcast %c125_i32 : i32 to vector<1x256xi32>
    %105 = arith.cmpi slt, %21, %104 : vector<1x256xi32>
    %cst_37 = arith.constant 0.000000e+00 : f32
    %106 = vector.shape_cast %105 : vector<1x256xi1> to vector<1x256xi1>
    %107 = vector.broadcast %106 : vector<1x256xi1> to vector<32x256xi1>
    %108 = vector.broadcast %cst_37 : f32 to vector<32x256xf32>
    %109 = arith.select %107, %103, %108 : vector<32x256xi1>, vector<32x256xf32>
    %c352 = arith.constant 352 : index
    %c0_38 = arith.constant 0 : index
    %110 = vector.load %arg8[%c352, %c0_38] : memref<544x256xf32, #tpu.memory_space<vmem>>, vector<32x256xf32>
    tpu.vector_store %arg8[%c352, %c0_38], %109 {strides = array<i32>} : memref<544x256xf32, #tpu.memory_space<vmem>>, vector<32x256xf32>,
    %c252_i32 = arith.constant 252 : i32
    %111 = tpu.dynamic_rotate %4 by %c252_i32 dim 1 : vector<32x256xf32>, i32 -> vector<32x256xf32>
    %c124_i32 = arith.constant 124 : i32
    %112 = vector.broadcast %c124_i32 : i32 to vector<1x256xi32>
    %113 = arith.cmpi slt, %21, %112 : vector<1x256xi32>
    %cst_39 = arith.constant 0.000000e+00 : f32
    %114 = vector.shape_cast %113 : vector<1x256xi1> to vector<1x256xi1>
    %115 = vector.broadcast %114 : vector<1x256xi1> to vector<32x256xi1>
    %116 = vector.broadcast %cst_39 : f32 to vector<32x256xf32>
    %117 = arith.select %115, %111, %116 : vector<32x256xi1>, vector<32x256xf32>
    %c384 = arith.constant 384 : index
    %c0_40 = arith.constant 0 : index
    %118 = vector.load %arg8[%c384, %c0_40] : memref<544x256xf32, #tpu.memory_space<vmem>>, vector<32x256xf32>
    tpu.vector_store %arg8[%c384, %c0_40], %117 {strides = array<i32>} : memref<544x256xf32, #tpu.memory_space<vmem>>, vector<32x256xf32>,
    %c251_i32 = arith.constant 251 : i32
    %119 = tpu.dynamic_rotate %4 by %c251_i32 dim 1 : vector<32x256xf32>, i32 -> vector<32x256xf32>
    %c123_i32 = arith.constant 123 : i32
    %120 = vector.broadcast %c123_i32 : i32 to vector<1x256xi32>
    %121 = arith.cmpi slt, %21, %120 : vector<1x256xi32>
    %cst_41 = arith.constant 0.000000e+00 : f32
    %122 = vector.shape_cast %121 : vector<1x256xi1> to vector<1x256xi1>
    %123 = vector.broadcast %122 : vector<1x256xi1> to vector<32x256xi1>
    %124 = vector.broadcast %cst_41 : f32 to vector<32x256xf32>
    %125 = arith.select %123, %119, %124 : vector<32x256xi1>, vector<32x256xf32>
    %c416 = arith.constant 416 : index
    %c0_42 = arith.constant 0 : index
    %126 = vector.load %arg8[%c416, %c0_42] : memref<544x256xf32, #tpu.memory_space<vmem>>, vector<32x256xf32>
    tpu.vector_store %arg8[%c416, %c0_42], %125 {strides = array<i32>} : memref<544x256xf32, #tpu.memory_space<vmem>>, vector<32x256xf32>,
    %c250_i32 = arith.constant 250 : i32
    %127 = tpu.dynamic_rotate %4 by %c250_i32 dim 1 : vector<32x256xf32>, i32 -> vector<32x256xf32>
    %c122_i32 = arith.constant 122 : i32
    %128 = vector.broadcast %c122_i32 : i32 to vector<1x256xi32>
    %129 = arith.cmpi slt, %21, %128 : vector<1x256xi32>
    %cst_43 = arith.constant 0.000000e+00 : f32
    %130 = vector.shape_cast %129 : vector<1x256xi1> to vector<1x256xi1>
    %131 = vector.broadcast %130 : vector<1x256xi1> to vector<32x256xi1>
    %132 = vector.broadcast %cst_43 : f32 to vector<32x256xf32>
    %133 = arith.select %131, %127, %132 : vector<32x256xi1>, vector<32x256xf32>
    %c448 = arith.constant 448 : index
    %c0_44 = arith.constant 0 : index
    %134 = vector.load %arg8[%c448, %c0_44] : memref<544x256xf32, #tpu.memory_space<vmem>>, vector<32x256xf32>
    tpu.vector_store %arg8[%c448, %c0_44], %133 {strides = array<i32>} : memref<544x256xf32, #tpu.memory_space<vmem>>, vector<32x256xf32>,
    %c249_i32 = arith.constant 249 : i32
    %135 = tpu.dynamic_rotate %4 by %c249_i32 dim 1 : vector<32x256xf32>, i32 -> vector<32x256xf32>
    %c121_i32 = arith.constant 121 : i32
    %136 = vector.broadcast %c121_i32 : i32 to vector<1x256xi32>
    %137 = arith.cmpi slt, %21, %136 : vector<1x256xi32>
    %cst_45 = arith.constant 0.000000e+00 : f32
    %138 = vector.shape_cast %137 : vector<1x256xi1> to vector<1x256xi1>
    %139 = vector.broadcast %138 : vector<1x256xi1> to vector<32x256xi1>
    %140 = vector.broadcast %cst_45 : f32 to vector<32x256xf32>
    %141 = arith.select %139, %135, %140 : vector<32x256xi1>, vector<32x256xf32>
    %c480 = arith.constant 480 : index
    %c0_46 = arith.constant 0 : index
    %142 = vector.load %arg8[%c480, %c0_46] : memref<544x256xf32, #tpu.memory_space<vmem>>, vector<32x256xf32>
    tpu.vector_store %arg8[%c480, %c0_46], %141 {strides = array<i32>} : memref<544x256xf32, #tpu.memory_space<vmem>>, vector<32x256xf32>,
    %c248_i32 = arith.constant 248 : i32
    %143 = tpu.dynamic_rotate %4 by %c248_i32 dim 1 : vector<32x256xf32>, i32 -> vector<32x256xf32>
    %c120_i32 = arith.constant 120 : i32
    %144 = vector.broadcast %c120_i32 : i32 to vector<1x256xi32>
    %145 = arith.cmpi slt, %21, %144 : vector<1x256xi32>
    %cst_47 = arith.constant 0.000000e+00 : f32
    %146 = vector.shape_cast %145 : vector<1x256xi1> to vector<1x256xi1>
    %147 = vector.broadcast %146 : vector<1x256xi1> to vector<32x256xi1>
    %148 = vector.broadcast %cst_47 : f32 to vector<32x256xf32>
    %149 = arith.select %147, %143, %148 : vector<32x256xi1>, vector<32x256xf32>
    %c512 = arith.constant 512 : index
    %c0_48 = arith.constant 0 : index
    %150 = vector.load %arg8[%c512, %c0_48] : memref<544x256xf32, #tpu.memory_space<vmem>>, vector<32x256xf32>
    tpu.vector_store %arg8[%c512, %c0_48], %149 {strides = array<i32>} : memref<544x256xf32, #tpu.memory_space<vmem>>, vector<32x256xf32>,
    %c0_49 = arith.constant 0 : index
    %c0_50 = arith.constant 0 : index
    %151 = vector.load %arg2[%c0_49, %c0_50] : memref<28x544xf32, #tpu.memory_space<vmem>>, vector<28x544xf32>
    %c0_51 = arith.constant 0 : index
    %c0_52 = arith.constant 0 : index
    %152 = vector.load %arg8[%c0_51, %c0_52] : memref<544x256xf32, #tpu.memory_space<vmem>>, vector<544x256xf32>
    %cst_53 = arith.constant dense<0.000000e+00> : vector<28x256xf32>
    %153 = tpu.matmul %151, %152, %cst_53 {dimension_numbers = #tpu.dot_dimension_numbers<[1], [0], [0], [1], [0, 0, 1, 1], [], []>} : vector<28x544xf32>, vector<544x256xf32>, vector<28x256xf32> -> vector<28x256xf32>
    %c0_54 = arith.constant 0 : index
    %c0_55 = arith.constant 0 : index
    %154 = vector.load %arg3[%c0_54, %c0_55] : memref<28x1xf32, #tpu.memory_space<vmem>>, vector<28x1xf32>
    %155 = vector.broadcast %154 : vector<28x1xf32> to vector<28x256xf32>
    %156 = arith.addf %153, %155 : vector<28x256xf32>
    %cst_56 = arith.constant dense<0.000000e+00> : vector<28xf32>
    %157 = vector.multi_reduction <add>, %156, %cst_56 [1] : vector<28x256xf32> to vector<28xf32>
    %158 = vector.shape_cast %157 : vector<28xf32> to vector<28x1xf32>
    %cst_57 = arith.constant 2.560000e+02 : f32
    %159 = vector.broadcast %cst_57 : f32 to vector<28x1xf32>
    %160 = arith.divf %158, %159 : vector<28x1xf32>
    %161 = arith.mulf %156, %156 : vector<28x256xf32>
    %cst_58 = arith.constant dense<0.000000e+00> : vector<28xf32>
    %162 = vector.multi_reduction <add>, %161, %cst_58 [1] : vector<28x256xf32> to vector<28xf32>
    %163 = vector.shape_cast %162 : vector<28xf32> to vector<28x1xf32>
    %cst_59 = arith.constant 2.560000e+02 : f32
    %164 = vector.broadcast %cst_59 : f32 to vector<28x1xf32>
    %165 = arith.divf %163, %164 : vector<28x1xf32>
    %166 = arith.mulf %160, %160 : vector<28x1xf32>
    %167 = arith.subf %165, %166 : vector<28x1xf32>
    %cst_60 = arith.constant 0.000000e+00 : f32
    %168 = vector.broadcast %cst_60 : f32 to vector<28x1xf32>
    %169 = arith.maximumf %167, %168 : vector<28x1xf32>
    %cst_61 = arith.constant 9.99999974E-6 : f32
    %170 = vector.broadcast %cst_61 : f32 to vector<28x1xf32>
    %171 = arith.addf %169, %170 : vector<28x1xf32>
    %172 = math.rsqrt %171 : vector<28x1xf32>
    %c0_62 = arith.constant 0 : index
    %c0_63 = arith.constant 0 : index
    %173 = vector.load %arg4[%c0_62, %c0_63] : memref<28x1xf32, #tpu.memory_space<vmem>>, vector<28x1xf32>
    %174 = arith.mulf %172, %173 : vector<28x1xf32>
    %c0_64 = arith.constant 0 : index
    %c0_65 = arith.constant 0 : index
    %175 = vector.load %arg5[%c0_64, %c0_65] : memref<28x1xf32, #tpu.memory_space<vmem>>, vector<28x1xf32>
    %176 = arith.mulf %160, %174 : vector<28x1xf32>
    %177 = arith.subf %175, %176 : vector<28x1xf32>
    %178 = vector.broadcast %174 : vector<28x1xf32> to vector<28x256xf32>
    %179 = arith.mulf %156, %178 : vector<28x256xf32>
    %180 = vector.broadcast %177 : vector<28x1xf32> to vector<28x256xf32>
    %181 = arith.addf %179, %180 : vector<28x256xf32>
    %182 = vector.extract_strided_slice %156 {offsets = [0, 0], sizes = [28, 128], strides = [1, 1]} : vector<28x256xf32> to vector<28x128xf32>
    %c0_66 = arith.constant 0 : index
    %c0_67 = arith.constant 0 : index
    %c0_68 = arith.constant 0 : index
    %183 = vector.load %arg6[%c0_66, %c0_67, %c0_68] : memref<2x28x128xf32, #tpu.memory_space<vmem>>, vector<1x28x128xf32>
    %184 = vector.shape_cast %183 : vector<1x28x128xf32> to vector<28x128xf32>
    %185 = vector.shape_cast %182 : vector<28x128xf32> to vector<1x28x128xf32>
    tpu.vector_store %arg6[%c0_66, %c0_67, %c0_68], %185 {strides = array<i32>} : memref<2x28x128xf32, #tpu.memory_space<vmem>>, vector<1x28x128xf32>,
    %186 = vector.extract_strided_slice %181 {offsets = [0, 0], sizes = [28, 128], strides = [1, 1]} : vector<28x256xf32> to vector<28x128xf32>
    %c0_69 = arith.constant 0 : index
    %c0_70 = arith.constant 0 : index
    %c0_71 = arith.constant 0 : index
    %187 = vector.load %arg7[%c0_69, %c0_70, %c0_71] : memref<2x28x128xf32, #tpu.memory_space<vmem>>, vector<1x28x128xf32>
    %188 = vector.shape_cast %187 : vector<1x28x128xf32> to vector<28x128xf32>
    %189 = vector.shape_cast %186 : vector<28x128xf32> to vector<1x28x128xf32>
    tpu.vector_store %arg7[%c0_69, %c0_70, %c0_71], %189 {strides = array<i32>} : memref<2x28x128xf32, #tpu.memory_space<vmem>>, vector<1x28x128xf32>,
    %190 = vector.extract_strided_slice %156 {offsets = [0, 128], sizes = [28, 128], strides = [1, 1]} : vector<28x256xf32> to vector<28x128xf32>
    %c1_72 = arith.constant 1 : index
    %c0_73 = arith.constant 0 : index
    %c0_74 = arith.constant 0 : index
    %191 = vector.load %arg6[%c1_72, %c0_73, %c0_74] : memref<2x28x128xf32, #tpu.memory_space<vmem>>, vector<1x28x128xf32>
    %192 = vector.shape_cast %191 : vector<1x28x128xf32> to vector<28x128xf32>
    %193 = vector.shape_cast %190 : vector<28x128xf32> to vector<1x28x128xf32>
    tpu.vector_store %arg6[%c1_72, %c0_73, %c0_74], %193 {strides = array<i32>} : memref<2x28x128xf32, #tpu.memory_space<vmem>>, vector<1x28x128xf32>,
    %194 = vector.extract_strided_slice %181 {offsets = [0, 128], sizes = [28, 128], strides = [1, 1]} : vector<28x256xf32> to vector<28x128xf32>
    %c1_75 = arith.constant 1 : index
    %c0_76 = arith.constant 0 : index
    %c0_77 = arith.constant 0 : index
    %195 = vector.load %arg7[%c1_75, %c0_76, %c0_77] : memref<2x28x128xf32, #tpu.memory_space<vmem>>, vector<1x28x128xf32>
    %196 = vector.shape_cast %195 : vector<1x28x128xf32> to vector<28x128xf32>
    %197 = vector.shape_cast %194 : vector<28x128xf32> to vector<1x28x128xf32>
    tpu.vector_store %arg7[%c1_75, %c0_76, %c0_77], %197 {strides = array<i32>} : memref<2x28x128xf32, #tpu.memory_space<vmem>>, vector<1x28x128xf32>,
    return
  }
  func.func @transform_0(%arg0: i32) -> (i32, i32, i32) {
    %c0_i32 = arith.constant 0 : i32
    %c0_i32_0 = arith.constant 0 : i32
    %c0_i32_1 = arith.constant 0 : i32
    %c0_i32_2 = arith.constant 0 : i32
    return %c0_i32, %c0_i32_0, %c0_i32_1 : i32, i32, i32
  }
  func.func @transform_1(%arg0: i32) -> (i32, i32) {
    %c0_i32 = arith.constant 0 : i32
    %c0_i32_0 = arith.constant 0 : i32
    %c0_i32_1 = arith.constant 0 : i32
    return %c0_i32, %c0_i32_0 : i32, i32
  }
  func.func @transform_2(%arg0: i32) -> (i32, i32) {
    %c0_i32 = arith.constant 0 : i32
    %c0_i32_0 = arith.constant 0 : i32
    %c0_i32_1 = arith.constant 0 : i32
    return %c0_i32, %c0_i32_0 : i32, i32
  }
  func.func @transform_3(%arg0: i32) -> (i32, i32) {
    %c0_i32 = arith.constant 0 : i32
    %c0_i32_0 = arith.constant 0 : i32
    %c0_i32_1 = arith.constant 0 : i32
    return %c0_i32, %c0_i32_0 : i32, i32
  }
  func.func @transform_4(%arg0: i32) -> (i32, i32) {
    %c0_i32 = arith.constant 0 : i32
    %c0_i32_0 = arith.constant 0 : i32
    %c0_i32_1 = arith.constant 0 : i32
    return %c0_i32, %c0_i32_0 : i32, i32
  }
  func.func @transform_5(%arg0: i32) -> (i32, i32, i32) {
    %c0_i32 = arith.constant 0 : i32
    %c0_i32_0 = arith.constant 0 : i32
    %c0_i32_1 = arith.constant 0 : i32
    %c0_i32_2 = arith.constant 0 : i32
    return %c0_i32, %c0_i32_0, %c0_i32_1 : i32, i32, i32
  }
  func.func @transform_6(%arg0: i32) -> (i32, i32, i32) {
    %c0_i32 = arith.constant 0 : i32
    %c0_i32_0 = arith.constant 0 : i32
    %c0_i32_1 = arith.constant 0 : i32
    %c0_i32_2 = arith.constant 0 : i32
    return %c0_i32, %c0_i32_0, %c0_i32_1 : i32, i32, i32
  }
}

</mosaic_0001>

<llo_original>
// kernel: mm_forward.1
$region0: #{mm_forward.1}
  #allocation0 [shape = 'u32[]', space=smem, size = 0x4, offset = 0x4, fixed_abs, tag = 'smem constant byte address 0x4 - core index']
  #allocation1 [shape = 'u32[144,128]{1,0:T(1,128)}', space=vmem, size = 0x12000, scoped, tag = 'internal scratch']
  #allocation2 [shape = 'f32[544,256]{1,0:T(8,128)}', space=vmem, size = 0x88000, scoped, tag = 'scratch operand']
  %s0 = inlined_call_operand.vmem [shape: f32[2,32,128], index: 0, kind: input, shape index: {}]
  %s1 = inlined_call_operand.vmem [shape: f32[28,544], index: 1, kind: input, shape index: {}]
  %s2 = inlined_call_operand.vmem [shape: f32[28,1], index: 2, kind: input, shape index: {}]
  %s3 = inlined_call_operand.vmem [shape: f32[28,1], index: 3, kind: input, shape index: {}]
  %s4 = inlined_call_operand.vmem [shape: f32[28,1], index: 4, kind: input, shape index: {}]
  %s5 = inlined_call_operand.vmem [shape: f32[2,28,128], index: 5, kind: output, shape index: {0}]
  %s6 = inlined_call_operand.vmem [shape: f32[2,28,128], index: 6, kind: output, shape index: {1}]
  %7 = xla_tuple %s5, %s6
  %s8 = sld [smem:[#allocation0]]
  $region38: #{mm_forward.1} parent=0
    _
  %s10 = ssub.s32 1, %s8
  %s11 = scalar_select 0, %s10, %s8
  // Predicated region
  $region2: #{mm_forward.1} parent=0 // pred_check
    _
  $region3: #{mm_forward.1} parent=0 // pred_check_branch
    %13 = sbr.rel (0) target = $region5
  $region4: #{mm_forward.1} parent=0 // pred_region
    _
  $region5: #{mm_forward.1} parent=0 // pred_fallthru
    _
  // Predicated region
  $region6: #{mm_forward.1} parent=0 // pred_check
    _
  $region7: #{mm_forward.1} parent=0 // pred_check_branch
    %15 = sbr.rel (0) target = $region9
  $region8: #{mm_forward.1} parent=0 // pred_region
    _
  $region9: #{mm_forward.1} parent=0 // pred_fallthru
    _
  // Predicated region
  $region10: #{mm_forward.1} parent=0 // pred_check
    _
  $region11: #{mm_forward.1} parent=0 // pred_check_branch
    %17 = sbr.rel (0) target = $region13
  $region12: #{mm_forward.1} parent=0 // pred_region
    _
  $region13: #{mm_forward.1} parent=0 // pred_fallthru
    _
  // Predicated region
  $region14: #{mm_forward.1} parent=0 // pred_check
    _
  $region15: #{mm_forward.1} parent=0 // pred_check_branch
    %19 = sbr.rel (0) target = $region17
  $region16: #{mm_forward.1} parent=0 // pred_region
    _
  $region17: #{mm_forward.1} parent=0 // pred_fallthru
    _
  // Predicated region
  $region18: #{mm_forward.1} parent=0 // pred_check
    _
  $region19: #{mm_forward.1} parent=0 // pred_check_branch
    %21 = sbr.rel (0) target = $region21
  $region20: #{mm_forward.1} parent=0 // pred_region
    _
  $region21: #{mm_forward.1} parent=0 // pred_fallthru
    _
  %v22 = vld [vmem:[%s0] sm:$0xff]
  %v23 = vld [vmem:[%s0 + $0x8] sm:$0xff]
  %v24 = vld [vmem:[%s0 + $0x10] sm:$0xff]
  %v25 = vld [vmem:[%s0 + $0x18] sm:$0xff]
  %s26 = scalar_lea.vmem %s0, 32
  %v27 = vld [vmem:[%s26] sm:$0xff]
  %v28 = vld [vmem:[%s26 + $0x8] sm:$0xff]
  %v29 = vld [vmem:[%s26 + $0x10] sm:$0xff]
  %v30 = vld [vmem:[%s26 + $0x18] sm:$0xff]
  %v31 = vlaneseq
  %v32 = vand.u32 %v31, 127
  %v33 = vadd.s32 %v32, 128
  %vm34 = vcmp.lt.s32.totalorder %v32, 0
  %v35 = vsub.s32 0, %v32
  %v36 = vsel %vm34, %v35, %v32
  %v37 = vshrl.u32 %v36, 7
  %v38 = vand.u32 %v36, 127
  %v39 = vsub.s32 0, %v38
  %v40 = vsel %vm34, %v39, %v38
  %vm41 = vcmp.lt.s32.totalorder %v33, 0
  %v42 = vsub.s32 0, %v33
  %v43 = vsel %vm41, %v42, %v33
  %v44 = vshrl.u32 %v43, 7
  %v45 = vand.u32 %v43, 127
  %v46 = vsub.s32 0, %v45
  %v47 = vsel %vm41, %v46, %v45
  %vm48 = vcmp.ne.s32.totalorder %v40, 0
  %vm49 = vcmp.ne.s32.totalorder %v47, 0
  %vm50 = vcmp.lt.s32.totalorder %v40, 0
  %vm51 = vcmp.lt.s32.totalorder %v47, 0
  %vm52 = vmand %vm50, %vm48
  %vm53 = vmand %vm51, %vm49
  %v54 = vadd.s32 %v40, 128
  %v55 = vadd.s32 %v47, 128
  %v56 = vsel %vm52, %v54, %v40
  %v57 = vsel %vm53, %v55, %v47
  %58 = vrot.lane.b32.xlu0 %v22, 8
  %v59 = vpop.permute.xlu0 %58
  %60 = vrot.lane.b32.xlu0 %v23, 8
  %v61 = vpop.permute.xlu0 %60
  %62 = vrot.lane.b32.xlu0 %v24, 8
  %v63 = vpop.permute.xlu0 %62
  %64 = vrot.lane.b32.xlu0 %v25, 8
  %v65 = vpop.permute.xlu0 %64
  %66 = vrot.lane.b32.xlu0 %v27, 8
  %v67 = vpop.permute.xlu0 %66
  %68 = vrot.lane.b32.xlu0 %v28, 8
  %v69 = vpop.permute.xlu0 %68
  %70 = vrot.lane.b32.xlu0 %v29, 8
  %v71 = vpop.permute.xlu0 %70
  %72 = vrot.lane.b32.xlu0 %v30, 8
  %v73 = vpop.permute.xlu0 %72
  %vm74 = vcmp.lt.s32.totalorder %v32, 8
  %v75 = vsel %vm74, %v59, %v67
  %v76 = vsel %vm74, %v61, %v69
  %v77 = vsel %vm74, %v63, %v71
  %v78 = vsel %vm74, %v65, %v73
  %v79 = vsel %vm74, %v67, %v59
  %v80 = vsel %vm74, %v69, %v61
  %v81 = vsel %vm74, %v71, %v63
  %v82 = vsel %vm74, %v73, %v65
  %vm83 = vcmp.ge.s32.totalorder %v56, 8
  %vm84 = vcmp.ge.s32.totalorder %v57, 8
  %v85 = vsel %vm83, 1, 0
  %v86 = vsel %vm84, 1, 0
  %vm87 = vcmp.eq.s32.totalorder %v85, 1
  %vm88 = vcmp.eq.s32.totalorder %v86, 1
  %v89 = vsel %vm87, %v79, 0.0
  %v90 = vsel %vm88, %v75, 0.0
  %v91 = vsel %vm87, %v80, 0.0
  %v92 = vsel %vm88, %v76, 0.0
  %v93 = vsel %vm87, %v81, 0.0
  %v94 = vsel %vm88, %v77, 0.0
  %v95 = vsel %vm87, %v82, 0.0
  %v96 = vsel %vm88, %v78, 0.0
  %97 = vst [vmem:[#allocation2] sm:$0xff] %v89
  %98 = vst [vmem:[#allocation2 + $0x8] sm:$0xff] %v90
  %99 = vst [vmem:[#allocation2 + $0x10] sm:$0xff] %v91
  %100 = vst [vmem:[#allocation2 + $0x18] sm:$0xff] %v92
  %101 = vst [vmem:[#allocation2 + $0x20] sm:$0xff] %v93
  %102 = vst [vmem:[#allocation2 + $0x28] sm:$0xff] %v94
  %103 = vst [vmem:[#allocation2 + $0x30] sm:$0xff] %v95
  %104 = vst [vmem:[#allocation2 + $0x38] sm:$0xff] %v96
  %105 = vrot.lane.b32.xlu0 %v22, 7
  %v106 = vpop.permute.xlu0 %105
  %107 = vrot.lane.b32.xlu0 %v23, 7
  %v108 = vpop.permute.xlu0 %107
  %109 = vrot.lane.b32.xlu0 %v24, 7
  %v110 = vpop.permute.xlu0 %109
  %111 = vrot.lane.b32.xlu0 %v25, 7
  %v112 = vpop.permute.xlu0 %111
  %113 = vrot.lane.b32.xlu0 %v27, 7
  %v114 = vpop.permute.xlu0 %113
  %115 = vrot.lane.b32.xlu0 %v28, 7
  %v116 = vpop.permute.xlu0 %115
  %117 = vrot.lane.b32.xlu0 %v29, 7
  %v118 = vpop.permute.xlu0 %117
  %119 = vrot.lane.b32.xlu0 %v30, 7
  %v120 = vpop.permute.xlu0 %119
  %vm121 = vcmp.lt.s32.totalorder %v32, 7
  %v122 = vsel %vm121, %v106, %v114
  %v123 = vsel %vm121, %v108, %v116
  %v124 = vsel %vm121, %v110, %v118
  %v125 = vsel %vm121, %v112, %v120
  %v126 = vsel %vm121, %v114, %v106
  %v127 = vsel %vm121, %v116, %v108
  %v128 = vsel %vm121, %v118, %v110
  %v129 = vsel %vm121, %v120, %v112
  %vm130 = vcmp.ge.s32.totalorder %v56, 7
  %vm131 = vcmp.ge.s32.totalorder %v57, 7
  %v132 = vsel %vm130, 1, 0
  %v133 = vsel %vm131, 1, 0
  %vm134 = vcmp.eq.s32.totalorder %v132, 1
  %vm135 = vcmp.eq.s32.totalorder %v133, 1
  %v136 = vsel %vm134, %v126, 0.0
  %v137 = vsel %vm135, %v122, 0.0
  %v138 = vsel %vm134, %v127, 0.0
  %v139 = vsel %vm135, %v123, 0.0
  %v140 = vsel %vm134, %v128, 0.0
  %v141 = vsel %vm135, %v124, 0.0
  %v142 = vsel %vm134, %v129, 0.0
  %v143 = vsel %vm135, %v125, 0.0
  %144 = vst [vmem:[#allocation2 + $0x40] sm:$0xff] %v136
  %145 = vst [vmem:[#allocation2 + $0x48] sm:$0xff] %v137
  %146 = vst [vmem:[#allocation2 + $0x50] sm:$0xff] %v138
  %147 = vst [vmem:[#allocation2 + $0x58] sm:$0xff] %v139
  %148 = vst [vmem:[#allocation2 + $0x60] sm:$0xff] %v140
  %149 = vst [vmem:[#allocation2 + $0x68] sm:$0xff] %v141
  %150 = vst [vmem:[#allocation2 + $0x70] sm:$0xff] %v142
  %151 = vst [vmem:[#allocation2 + $0x78] sm:$0xff] %v143
  %152 = vrot.lane.b32.xlu0 %v22, 6
  %v153 = vpop.permute.xlu0 %152
  %154 = vrot.lane.b32.xlu0 %v23, 6
  %v155 = vpop.permute.xlu0 %154
  %156 = vrot.lane.b32.xlu0 %v24, 6
  %v157 = vpop.permute.xlu0 %156
  %158 = vrot.lane.b32.xlu0 %v25, 6
  %v159 = vpop.permute.xlu0 %158
  %160 = vrot.lane.b32.xlu0 %v27, 6
  %v161 = vpop.permute.xlu0 %160
  %162 = vrot.lane.b32.xlu0 %v28, 6
  %v163 = vpop.permute.xlu0 %162
  %164 = vrot.lane.b32.xlu0 %v29, 6
  %v165 = vpop.permute.xlu0 %164
  %166 = vrot.lane.b32.xlu0 %v30, 6
  %v167 = vpop.permute.xlu0 %166
  %vm168 = vcmp.lt.s32.totalorder %v32, 6
  %v169 = vsel %vm168, %v153, %v161
  %v170 = vsel %vm168, %v155, %v163
  %v171 = vsel %vm168, %v157, %v165
  %v172 = vsel %vm168, %v159, %v167
  %v173 = vsel %vm168, %v161, %v153
  %v174 = vsel %vm168, %v163, %v155
  %v175 = vsel %vm168, %v165, %v157
  %v176 = vsel %vm168, %v167, %v159
  %vm177 = vcmp.ge.s32.totalorder %v56, 6
  %vm178 = vcmp.ge.s32.totalorder %v57, 6
  %v179 = vsel %vm177, 1, 0
  %v180 = vsel %vm178, 1, 0
  %vm181 = vcmp.eq.s32.totalorder %v179, 1
  %vm182 = vcmp.eq.s32.totalorder %v180, 1
  %v183 = vsel %vm181, %v173, 0.0
  %v184 = vsel %vm182, %v169, 0.0
  %v185 = vsel %vm181, %v174, 0.0
  %v186 = vsel %vm182, %v170, 0.0
  %v187 = vsel %vm181, %v175, 0.0
  %v188 = vsel %vm182, %v171, 0.0
  %v189 = vsel %vm181, %v176, 0.0
  %v190 = vsel %vm182, %v172, 0.0
  %191 = vst [vmem:[#allocation2 + $0x80] sm:$0xff] %v183
  %192 = vst [vmem:[#allocation2 + $0x88] sm:$0xff] %v184
  %193 = vst [vmem:[#allocation2 + $0x90] sm:$0xff] %v185
  %194 = vst [vmem:[#allocation2 + $0x98] sm:$0xff] %v186
  %195 = vst [vmem:[#allocation2 + $0xa0] sm:$0xff] %v187
  %196 = vst [vmem:[#allocation2 + $0xa8] sm:$0xff] %v188
  %197 = vst [vmem:[#allocation2 + $0xb0] sm:$0xff] %v189
  %198 = vst [vmem:[#allocation2 + $0xb8] sm:$0xff] %v190
  %199 = vrot.lane.b32.xlu0 %v22, 5
  %v200 = vpop.permute.xlu0 %199
  %201 = vrot.lane.b32.xlu0 %v23, 5
  %v202 = vpop.permute.xlu0 %201
  %203 = vrot.lane.b32.xlu0 %v24, 5
  %v204 = vpop.permute.xlu0 %203
  %205 = vrot.lane.b32.xlu0 %v25, 5
  %v206 = vpop.permute.xlu0 %205
  %207 = vrot.lane.b32.xlu0 %v27, 5
  %v208 = vpop.permute.xlu0 %207
  %209 = vrot.lane.b32.xlu0 %v28, 5
  %v210 = vpop.permute.xlu0 %209
  %211 = vrot.lane.b32.xlu0 %v29, 5
  %v212 = vpop.permute.xlu0 %211
  %213 = vrot.lane.b32.xlu0 %v30, 5
  %v214 = vpop.permute.xlu0 %213
  %vm215 = vcmp.lt.s32.totalorder %v32, 5
  %v216 = vsel %vm215, %v200, %v208
  %v217 = vsel %vm215, %v202, %v210
  %v218 = vsel %vm215, %v204, %v212
  %v219 = vsel %vm215, %v206, %v214
  %v220 = vsel %vm215, %v208, %v200
  %v221 = vsel %vm215, %v210, %v202
  %v222 = vsel %vm215, %v212, %v204
  %v223 = vsel %vm215, %v214, %v206
  %vm224 = vcmp.ge.s32.totalorder %v56, 5
  %vm225 = vcmp.ge.s32.totalorder %v57, 5
  %v226 = vsel %vm224, 1, 0
  %v227 = vsel %vm225, 1, 0
  %vm228 = vcmp.eq.s32.totalorder %v226, 1
  %vm229 = vcmp.eq.s32.totalorder %v227, 1
  %v230 = vsel %vm228, %v220, 0.0
  %v231 = vsel %vm229, %v216, 0.0
  %v232 = vsel %vm228, %v221, 0.0
  %v233 = vsel %vm229, %v217, 0.0
  %v234 = vsel %vm228, %v222, 0.0
  %v235 = vsel %vm229, %v218, 0.0
  %v236 = vsel %vm228, %v223, 0.0
  %v237 = vsel %vm229, %v219, 0.0
  %238 = vst [vmem:[#allocation2 + $0xc0] sm:$0xff] %v230
  %239 = vst [vmem:[#allocation2 + $0xc8] sm:$0xff] %v231
  %240 = vst [vmem:[#allocation2 + $0xd0] sm:$0xff] %v232
  %241 = vst [vmem:[#allocation2 + $0xd8] sm:$0xff] %v233
  %242 = vst [vmem:[#allocation2 + $0xe0] sm:$0xff] %v234
  %243 = vst [vmem:[#allocation2 + $0xe8] sm:$0xff] %v235
  %244 = vst [vmem:[#allocation2 + $0xf0] sm:$0xff] %v236
  %245 = vst [vmem:[#allocation2 + $0xf8] sm:$0xff] %v237
  %246 = vrot.lane.b32.xlu0 %v22, 4
  %v247 = vpop.permute.xlu0 %246
  %248 = vrot.lane.b32.xlu0 %v23, 4
  %v249 = vpop.permute.xlu0 %248
  %250 = vrot.lane.b32.xlu0 %v24, 4
  %v251 = vpop.permute.xlu0 %250
  %252 = vrot.lane.b32.xlu0 %v25, 4
  %v253 = vpop.permute.xlu0 %252
  %254 = vrot.lane.b32.xlu0 %v27, 4
  %v255 = vpop.permute.xlu0 %254
  %256 = vrot.lane.b32.xlu0 %v28, 4
  %v257 = vpop.permute.xlu0 %256
  %258 = vrot.lane.b32.xlu0 %v29, 4
  %v259 = vpop.permute.xlu0 %258
  %260 = vrot.lane.b32.xlu0 %v30, 4
  %v261 = vpop.permute.xlu0 %260
  %vm262 = vcmp.lt.s32.totalorder %v32, 4
  %v263 = vsel %vm262, %v247, %v255
  %v264 = vsel %vm262, %v249, %v257
  %v265 = vsel %vm262, %v251, %v259
  %v266 = vsel %vm262, %v253, %v261
  %v267 = vsel %vm262, %v255, %v247
  %v268 = vsel %vm262, %v257, %v249
  %v269 = vsel %vm262, %v259, %v251
  %v270 = vsel %vm262, %v261, %v253
  %vm271 = vcmp.ge.s32.totalorder %v56, 4
  %vm272 = vcmp.ge.s32.totalorder %v57, 4
  %v273 = vsel %vm271, 1, 0
  %v274 = vsel %vm272, 1, 0
  %vm275 = vcmp.eq.s32.totalorder %v273, 1
  %vm276 = vcmp.eq.s32.totalorder %v274, 1
  %v277 = vsel %vm275, %v267, 0.0
  %v278 = vsel %vm276, %v263, 0.0
  %v279 = vsel %vm275, %v268, 0.0
  %v280 = vsel %vm276, %v264, 0.0
  %v281 = vsel %vm275, %v269, 0.0
  %v282 = vsel %vm276, %v265, 0.0
  %v283 = vsel %vm275, %v270, 0.0
  %v284 = vsel %vm276, %v266, 0.0
  %285 = vst [vmem:[#allocation2 + $0x100] sm:$0xff] %v277
  %286 = vst [vmem:[#allocation2 + $0x108] sm:$0xff] %v278
  %287 = vst [vmem:[#allocation2 + $0x110] sm:$0xff] %v279
  %288 = vst [vmem:[#allocation2 + $0x118] sm:$0xff] %v280
  %289 = vst [vmem:[#allocation2 + $0x120] sm:$0xff] %v281
  %290 = vst [vmem:[#allocation2 + $0x128] sm:$0xff] %v282
  %291 = vst [vmem:[#allocation2 + $0x130] sm:$0xff] %v283
  %292 = vst [vmem:[#allocation2 + $0x138] sm:$0xff] %v284
  %293 = vrot.lane.b32.xlu0 %v22, 3
  %v294 = vpop.permute.xlu0 %293
  %295 = vrot.lane.b32.xlu0 %v23, 3
  %v296 = vpop.permute.xlu0 %295
  %297 = vrot.lane.b32.xlu0 %v24, 3
  %v298 = vpop.permute.xlu0 %297
  %299 = vrot.lane.b32.xlu0 %v25, 3
  %v300 = vpop.permute.xlu0 %299
  %301 = vrot.lane.b32.xlu0 %v27, 3
  %v302 = vpop.permute.xlu0 %301
  %303 = vrot.lane.b32.xlu0 %v28, 3
  %v304 = vpop.permute.xlu0 %303
  %305 = vrot.lane.b32.xlu0 %v29, 3
  %v306 = vpop.permute.xlu0 %305
  %307 = vrot.lane.b32.xlu0 %v30, 3
  %v308 = vpop.permute.xlu0 %307
  %vm309 = vcmp.lt.s32.totalorder %v32, 3
  %v310 = vsel %vm309, %v294, %v302
  %v311 = vsel %vm309, %v296, %v304
  %v312 = vsel %vm309, %v298, %v306
  %v313 = vsel %vm309, %v300, %v308
  %v314 = vsel %vm309, %v302, %v294
  %v315 = vsel %vm309, %v304, %v296
  %v316 = vsel %vm309, %v306, %v298
  %v317 = vsel %vm309, %v308, %v300
  %vm318 = vcmp.ge.s32.totalorder %v56, 3
  %vm319 = vcmp.ge.s32.totalorder %v57, 3
  %v320 = vsel %vm318, 1, 0
  %v321 = vsel %vm319, 1, 0
  %vm322 = vcmp.eq.s32.totalorder %v320, 1
  %vm323 = vcmp.eq.s32.totalorder %v321, 1
  %v324 = vsel %vm322, %v314, 0.0
  %v325 = vsel %vm323, %v310, 0.0
  %v326 = vsel %vm322, %v315, 0.0
  %v327 = vsel %vm323, %v311, 0.0
  %v328 = vsel %vm322, %v316, 0.0
  %v329 = vsel %vm323, %v312, 0.0
  %v330 = vsel %vm322, %v317, 0.0
  %v331 = vsel %vm323, %v313, 0.0
  %332 = vst [vmem:[#allocation2 + $0x140] sm:$0xff] %v324
  %333 = vst [vmem:[#allocation2 + $0x148] sm:$0xff] %v325
  %334 = vst [vmem:[#allocation2 + $0x150] sm:$0xff] %v326
  %335 = vst [vmem:[#allocation2 + $0x158] sm:$0xff] %v327
  %336 = vst [vmem:[#allocation2 + $0x160] sm:$0xff] %v328
  %337 = vst [vmem:[#allocation2 + $0x168] sm:$0xff] %v329
  %338 = vst [vmem:[#allocation2 + $0x170] sm:$0xff] %v330
  %339 = vst [vmem:[#allocation2 + $0x178] sm:$0xff] %v331
  %340 = vrot.lane.b32.xlu0 %v22, 2
  %v341 = vpop.permute.xlu0 %340
  %342 = vrot.lane.b32.xlu0 %v23, 2
  %v343 = vpop.permute.xlu0 %342
  %344 = vrot.lane.b32.xlu0 %v24, 2
  %v345 = vpop.permute.xlu0 %344
  %346 = vrot.lane.b32.xlu0 %v25, 2
  %v347 = vpop.permute.xlu0 %346
  %348 = vrot.lane.b32.xlu0 %v27, 2
  %v349 = vpop.permute.xlu0 %348
  %350 = vrot.lane.b32.xlu0 %v28, 2
  %v351 = vpop.permute.xlu0 %350
  %352 = vrot.lane.b32.xlu0 %v29, 2
  %v353 = vpop.permute.xlu0 %352
  %354 = vrot.lane.b32.xlu0 %v30, 2
  %v355 = vpop.permute.xlu0 %354
  %vm356 = vcmp.lt.s32.totalorder %v32, 2
  %v357 = vsel %vm356, %v341, %v349
  %v358 = vsel %vm356, %v343, %v351
  %v359 = vsel %vm356, %v345, %v353
  %v360 = vsel %vm356, %v347, %v355
  %v361 = vsel %vm356, %v349, %v341
  %v362 = vsel %vm356, %v351, %v343
  %v363 = vsel %vm356, %v353, %v345
  %v364 = vsel %vm356, %v355, %v347
  %vm365 = vcmp.ge.s32.totalorder %v56, 2
  %vm366 = vcmp.ge.s32.totalorder %v57, 2
  %v367 = vsel %vm365, 1, 0
  %v368 = vsel %vm366, 1, 0
  %vm369 = vcmp.eq.s32.totalorder %v367, 1
  %vm370 = vcmp.eq.s32.totalorder %v368, 1
  %v371 = vsel %vm369, %v361, 0.0
  %v372 = vsel %vm370, %v357, 0.0
  %v373 = vsel %vm369, %v362, 0.0
  %v374 = vsel %vm370, %v358, 0.0
  %v375 = vsel %vm369, %v363, 0.0
  %v376 = vsel %vm370, %v359, 0.0
  %v377 = vsel %vm369, %v364, 0.0
  %v378 = vsel %vm370, %v360, 0.0
  %379 = vst [vmem:[#allocation2 + $0x180] sm:$0xff] %v371
  %380 = vst [vmem:[#allocation2 + $0x188] sm:$0xff] %v372
  %381 = vst [vmem:[#allocation2 + $0x190] sm:$0xff] %v373
  %382 = vst [vmem:[#allocation2 + $0x198] sm:$0xff] %v374
  %383 = vst [vmem:[#allocation2 + $0x1a0] sm:$0xff] %v375
  %384 = vst [vmem:[#allocation2 + $0x1a8] sm:$0xff] %v376
  %385 = vst [vmem:[#allocation2 + $0x1b0] sm:$0xff] %v377
  %386 = vst [vmem:[#allocation2 + $0x1b8] sm:$0xff] %v378
  %387 = vrot.lane.b32.xlu0 %v22, 1
  %v388 = vpop.permute.xlu0 %387
  %389 = vrot.lane.b32.xlu0 %v23, 1
  %v390 = vpop.permute.xlu0 %389
  %391 = vrot.lane.b32.xlu0 %v24, 1
  %v392 = vpop.permute.xlu0 %391
  %393 = vrot.lane.b32.xlu0 %v25, 1
  %v394 = vpop.permute.xlu0 %393
  %395 = vrot.lane.b32.xlu0 %v27, 1
  %v396 = vpop.permute.xlu0 %395
  %397 = vrot.lane.b32.xlu0 %v28, 1
  %v398 = vpop.permute.xlu0 %397
  %399 = vrot.lane.b32.xlu0 %v29, 1
  %v400 = vpop.permute.xlu0 %399
  %401 = vrot.lane.b32.xlu0 %v30, 1
  %v402 = vpop.permute.xlu0 %401
  %vm403 = vcmp.lt.s32.totalorder %v32, 1
  %v404 = vsel %vm403, %v388, %v396
  %v405 = vsel %vm403, %v390, %v398
  %v406 = vsel %vm403, %v392, %v400
  %v407 = vsel %vm403, %v394, %v402
  %v408 = vsel %vm403, %v396, %v388
  %v409 = vsel %vm403, %v398, %v390
  %v410 = vsel %vm403, %v400, %v392
  %v411 = vsel %vm403, %v402, %v394
  %vm412 = vcmp.ge.s32.totalorder %v56, 1
  %vm413 = vcmp.ge.s32.totalorder %v57, 1
  %v414 = vsel %vm412, 1, 0
  %v415 = vsel %vm413, 1, 0
  %vm416 = vcmp.eq.s32.totalorder %v414, 1
  %vm417 = vcmp.eq.s32.totalorder %v415, 1
  %v418 = vsel %vm416, %v408, 0.0
  %v419 = vsel %vm417, %v404, 0.0
  %v420 = vsel %vm416, %v409, 0.0
  %v421 = vsel %vm417, %v405, 0.0
  %v422 = vsel %vm416, %v410, 0.0
  %v423 = vsel %vm417, %v406, 0.0
  %v424 = vsel %vm416, %v411, 0.0
  %v425 = vsel %vm417, %v407, 0.0
  %426 = vst [vmem:[#allocation2 + $0x1c0] sm:$0xff] %v418
  %427 = vst [vmem:[#allocation2 + $0x1c8] sm:$0xff] %v419
  %428 = vst [vmem:[#allocation2 + $0x1d0] sm:$0xff] %v420
  %429 = vst [vmem:[#allocation2 + $0x1d8] sm:$0xff] %v421
  %430 = vst [vmem:[#allocation2 + $0x1e0] sm:$0xff] %v422
  %431 = vst [vmem:[#allocation2 + $0x1e8] sm:$0xff] %v423
  %432 = vst [vmem:[#allocation2 + $0x1f0] sm:$0xff] %v424
  %433 = vst [vmem:[#allocation2 + $0x1f8] sm:$0xff] %v425
  %434 = vst [vmem:[#allocation2 + $0x200] sm:$0xff] %v22
  %435 = vst [vmem:[#allocation2 + $0x208] sm:$0xff] %v27
  %436 = vst [vmem:[#allocation2 + $0x210] sm:$0xff] %v23
  %437 = vst [vmem:[#allocation2 + $0x218] sm:$0xff] %v28
  %438 = vst [vmem:[#allocation2 + $0x220] sm:$0xff] %v24
  %439 = vst [vmem:[#allocation2 + $0x228] sm:$0xff] %v29
  %440 = vst [vmem:[#allocation2 + $0x230] sm:$0xff] %v25
  %441 = vst [vmem:[#allocation2 + $0x238] sm:$0xff] %v30
  %442 = vrot.lane.b32.xlu0 %v22, 127
  %v443 = vpop.permute.xlu0 %442
  %444 = vrot.lane.b32.xlu0 %v23, 127
  %v445 = vpop.permute.xlu0 %444
  %446 = vrot.lane.b32.xlu0 %v24, 127
  %v447 = vpop.permute.xlu0 %446
  %448 = vrot.lane.b32.xlu0 %v25, 127
  %v449 = vpop.permute.xlu0 %448
  %450 = vrot.lane.b32.xlu0 %v27, 127
  %v451 = vpop.permute.xlu0 %450
  %452 = vrot.lane.b32.xlu0 %v28, 127
  %v453 = vpop.permute.xlu0 %452
  %454 = vrot.lane.b32.xlu0 %v29, 127
  %v455 = vpop.permute.xlu0 %454
  %456 = vrot.lane.b32.xlu0 %v30, 127
  %v457 = vpop.permute.xlu0 %456
  %vm458 = vcmp.lt.s32.totalorder %v32, 127
  %v459 = vsel %vm458, %v443, %v451
  %v460 = vsel %vm458, %v445, %v453
  %v461 = vsel %vm458, %v447, %v455
  %v462 = vsel %vm458, %v449, %v457
  %v463 = vsel %vm458, %v451, %v443
  %v464 = vsel %vm458, %v453, %v445
  %v465 = vsel %vm458, %v455, %v447
  %v466 = vsel %vm458, %v457, %v449
  %vm467 = vcmp.lt.s32.totalorder %v56, 127
  %vm468 = vcmp.lt.s32.totalorder %v57, 127
  %v469 = vsel %vm467, 1, 0
  %v470 = vsel %vm468, 1, 0
  %vm471 = vcmp.eq.s32.totalorder %v469, 1
  %vm472 = vcmp.eq.s32.totalorder %v470, 1
  %v473 = vsel %vm471, %v459, 0.0
  %v474 = vsel %vm472, %v463, 0.0
  %v475 = vsel %vm471, %v460, 0.0
  %v476 = vsel %vm472, %v464, 0.0
  %v477 = vsel %vm471, %v461, 0.0
  %v478 = vsel %vm472, %v465, 0.0
  %v479 = vsel %vm471, %v462, 0.0
  %v480 = vsel %vm472, %v466, 0.0
  %481 = vst [vmem:[#allocation2 + $0x240] sm:$0xff] %v473
  %482 = vst [vmem:[#allocation2 + $0x248] sm:$0xff] %v474
  %483 = vst [vmem:[#allocation2 + $0x250] sm:$0xff] %v475
  %484 = vst [vmem:[#allocation2 + $0x258] sm:$0xff] %v476
  %485 = vst [vmem:[#allocation2 + $0x260] sm:$0xff] %v477
  %486 = vst [vmem:[#allocation2 + $0x268] sm:$0xff] %v478
  %487 = vst [vmem:[#allocation2 + $0x270] sm:$0xff] %v479
  %488 = vst [vmem:[#allocation2 + $0x278] sm:$0xff] %v480
  %489 = vrot.lane.b32.xlu0 %v22, 126
  %v490 = vpop.permute.xlu0 %489
  %491 = vrot.lane.b32.xlu0 %v23, 126
  %v492 = vpop.permute.xlu0 %491
  %493 = vrot.lane.b32.xlu0 %v24, 126
  %v494 = vpop.permute.xlu0 %493
  %495 = vrot.lane.b32.xlu0 %v25, 126
  %v496 = vpop.permute.xlu0 %495
  %497 = vrot.lane.b32.xlu0 %v27, 126
  %v498 = vpop.permute.xlu0 %497
  %499 = vrot.lane.b32.xlu0 %v28, 126
  %v500 = vpop.permute.xlu0 %499
  %501 = vrot.lane.b32.xlu0 %v29, 126
  %v502 = vpop.permute.xlu0 %501
  %503 = vrot.lane.b32.xlu0 %v30, 126
  %v504 = vpop.permute.xlu0 %503
  %vm505 = vcmp.lt.s32.totalorder %v32, 126
  %v506 = vsel %vm505, %v490, %v498
  %v507 = vsel %vm505, %v492, %v500
  %v508 = vsel %vm505, %v494, %v502
  %v509 = vsel %vm505, %v496, %v504
  %v510 = vsel %vm505, %v498, %v490
  %v511 = vsel %vm505, %v500, %v492
  %v512 = vsel %vm505, %v502, %v494
  %v513 = vsel %vm505, %v504, %v496
  %vm514 = vcmp.lt.s32.totalorder %v56, 126
  %vm515 = vcmp.lt.s32.totalorder %v57, 126
  %v516 = vsel %vm514, 1, 0
  %v517 = vsel %vm515, 1, 0
  %vm518 = vcmp.eq.s32.totalorder %v516, 1
  %vm519 = vcmp.eq.s32.totalorder %v517, 1
  %v520 = vsel %vm518, %v506, 0.0
  %v521 = vsel %vm519, %v510, 0.0
  %v522 = vsel %vm518, %v507, 0.0
  %v523 = vsel %vm519, %v511, 0.0
  %v524 = vsel %vm518, %v508, 0.0
  %v525 = vsel %vm519, %v512, 0.0
  %v526 = vsel %vm518, %v509, 0.0
  %v527 = vsel %vm519, %v513, 0.0
  %528 = vst [vmem:[#allocation2 + $0x280] sm:$0xff] %v520
  %529 = vst [vmem:[#allocation2 + $0x288] sm:$0xff] %v521
  %530 = vst [vmem:[#allocation2 + $0x290] sm:$0xff] %v522
  %531 = vst [vmem:[#allocation2 + $0x298] sm:$0xff] %v523
  %532 = vst [vmem:[#allocation2 + $0x2a0] sm:$0xff] %v524
  %533 = vst [vmem:[#allocation2 + $0x2a8] sm:$0xff] %v525
  %534 = vst [vmem:[#allocation2 + $0x2b0] sm:$0xff] %v526
  %535 = vst [vmem:[#allocation2 + $0x2b8] sm:$0xff] %v527
  %536 = vrot.lane.b32.xlu0 %v22, 125
  %v537 = vpop.permute.xlu0 %536
  %538 = vrot.lane.b32.xlu0 %v23, 125
  %v539 = vpop.permute.xlu0 %538
  %540 = vrot.lane.b32.xlu0 %v24, 125
  %v541 = vpop.permute.xlu0 %540
  %542 = vrot.lane.b32.xlu0 %v25, 125
  %v543 = vpop.permute.xlu0 %542
  %544 = vrot.lane.b32.xlu0 %v27, 125
  %v545 = vpop.permute.xlu0 %544
  %546 = vrot.lane.b32.xlu0 %v28, 125
  %v547 = vpop.permute.xlu0 %546
  %548 = vrot.lane.b32.xlu0 %v29, 125
  %v549 = vpop.permute.xlu0 %548
  %550 = vrot.lane.b32.xlu0 %v30, 125
  %v551 = vpop.permute.xlu0 %550
  %vm552 = vcmp.lt.s32.totalorder %v32, 125
  %v553 = vsel %vm552, %v537, %v545
  %v554 = vsel %vm552, %v539, %v547
  %v555 = vsel %vm552, %v541, %v549
  %v556 = vsel %vm552, %v543, %v551
  %v557 = vsel %vm552, %v545, %v537
  %v558 = vsel %vm552, %v547, %v539
  %v559 = vsel %vm552, %v549, %v541
  %v560 = vsel %vm552, %v551, %v543
  %vm561 = vcmp.lt.s32.totalorder %v56, 125
  %vm562 = vcmp.lt.s32.totalorder %v57, 125
  %v563 = vsel %vm561, 1, 0
  %v564 = vsel %vm562, 1, 0
  %vm565 = vcmp.eq.s32.totalorder %v563, 1
  %vm566 = vcmp.eq.s32.totalorder %v564, 1
  %v567 = vsel %vm565, %v553, 0.0
  %v568 = vsel %vm566, %v557, 0.0
  %v569 = vsel %vm565, %v554, 0.0
  %v570 = vsel %vm566, %v558, 0.0
  %v571 = vsel %vm565, %v555, 0.0
  %v572 = vsel %vm566, %v559, 0.0
  %v573 = vsel %vm565, %v556, 0.0
  %v574 = vsel %vm566, %v560, 0.0
  %575 = vst [vmem:[#allocation2 + $0x2c0] sm:$0xff] %v567
  %576 = vst [vmem:[#allocation2 + $0x2c8] sm:$0xff] %v568
  %577 = vst [vmem:[#allocation2 + $0x2d0] sm:$0xff] %v569
  %578 = vst [vmem:[#allocation2 + $0x2d8] sm:$0xff] %v570
  %579 = vst [vmem:[#allocation2 + $0x2e0] sm:$0xff] %v571
  %580 = vst [vmem:[#allocation2 + $0x2e8] sm:$0xff] %v572
  %581 = vst [vmem:[#allocation2 + $0x2f0] sm:$0xff] %v573
  %582 = vst [vmem:[#allocation2 + $0x2f8] sm:$0xff] %v574
  %583 = vrot.lane.b32.xlu0 %v22, 124
  %v584 = vpop.permute.xlu0 %583
  %585 = vrot.lane.b32.xlu0 %v23, 124
  %v586 = vpop.permute.xlu0 %585
  %587 = vrot.lane.b32.xlu0 %v24, 124
  %v588 = vpop.permute.xlu0 %587
  %589 = vrot.lane.b32.xlu0 %v25, 124
  %v590 = vpop.permute.xlu0 %589
  %591 = vrot.lane.b32.xlu0 %v27, 124
  %v592 = vpop.permute.xlu0 %591
  %593 = vrot.lane.b32.xlu0 %v28, 124
  %v594 = vpop.permute.xlu0 %593
  %595 = vrot.lane.b32.xlu0 %v29, 124
  %v596 = vpop.permute.xlu0 %595
  %597 = vrot.lane.b32.xlu0 %v30, 124
  %v598 = vpop.permute.xlu0 %597
  %vm599 = vcmp.lt.s32.totalorder %v32, 124
  %v600 = vsel %vm599, %v584, %v592
  %v601 = vsel %vm599, %v586, %v594
  %v602 = vsel %vm599, %v588, %v596
  %v603 = vsel %vm599, %v590, %v598
  %v604 = vsel %vm599, %v592, %v584
  %v605 = vsel %vm599, %v594, %v586
  %v606 = vsel %vm599, %v596, %v588
  %v607 = vsel %vm599, %v598, %v590
  %vm608 = vcmp.lt.s32.totalorder %v56, 124
  %vm609 = vcmp.lt.s32.totalorder %v57, 124
  %v610 = vsel %vm608, 1, 0
  %v611 = vsel %vm609, 1, 0
  %vm612 = vcmp.eq.s32.totalorder %v610, 1
  %vm613 = vcmp.eq.s32.totalorder %v611, 1
  %v614 = vsel %vm612, %v600, 0.0
  %v615 = vsel %vm613, %v604, 0.0
  %v616 = vsel %vm612, %v601, 0.0
  %v617 = vsel %vm613, %v605, 0.0
  %v618 = vsel %vm612, %v602, 0.0
  %v619 = vsel %vm613, %v606, 0.0
  %v620 = vsel %vm612, %v603, 0.0
  %v621 = vsel %vm613, %v607, 0.0
  %622 = vst [vmem:[#allocation2 + $0x300] sm:$0xff] %v614
  %623 = vst [vmem:[#allocation2 + $0x308] sm:$0xff] %v615
  %624 = vst [vmem:[#allocation2 + $0x310] sm:$0xff] %v616
  %625 = vst [vmem:[#allocation2 + $0x318] sm:$0xff] %v617
  %626 = vst [vmem:[#allocation2 + $0x320] sm:$0xff] %v618
  %627 = vst [vmem:[#allocation2 + $0x328] sm:$0xff] %v619
  %628 = vst [vmem:[#allocation2 + $0x330] sm:$0xff] %v620
  %629 = vst [vmem:[#allocation2 + $0x338] sm:$0xff] %v621
  %630 = vrot.lane.b32.xlu0 %v22, 123
  %v631 = vpop.permute.xlu0 %630
  %632 = vrot.lane.b32.xlu0 %v23, 123
  %v633 = vpop.permute.xlu0 %632
  %634 = vrot.lane.b32.xlu0 %v24, 123
  %v635 = vpop.permute.xlu0 %634
  %636 = vrot.lane.b32.xlu0 %v25, 123
  %v637 = vpop.permute.xlu0 %636
  %638 = vrot.lane.b32.xlu0 %v27, 123
  %v639 = vpop.permute.xlu0 %638
  %640 = vrot.lane.b32.xlu0 %v28, 123
  %v641 = vpop.permute.xlu0 %640
  %642 = vrot.lane.b32.xlu0 %v29, 123
  %v643 = vpop.permute.xlu0 %642
  %644 = vrot.lane.b32.xlu0 %v30, 123
  %v645 = vpop.permute.xlu0 %644
  %vm646 = vcmp.lt.s32.totalorder %v32, 123
  %v647 = vsel %vm646, %v631, %v639
  %v648 = vsel %vm646, %v633, %v641
  %v649 = vsel %vm646, %v635, %v643
  %v650 = vsel %vm646, %v637, %v645
  %v651 = vsel %vm646, %v639, %v631
  %v652 = vsel %vm646, %v641, %v633
  %v653 = vsel %vm646, %v643, %v635
  %v654 = vsel %vm646, %v645, %v637
  %vm655 = vcmp.lt.s32.totalorder %v56, 123
  %vm656 = vcmp.lt.s32.totalorder %v57, 123
  %v657 = vsel %vm655, 1, 0
  %v658 = vsel %vm656, 1, 0
  %vm659 = vcmp.eq.s32.totalorder %v657, 1
  %vm660 = vcmp.eq.s32.totalorder %v658, 1
  %v661 = vsel %vm659, %v647, 0.0
  %v662 = vsel %vm660, %v651, 0.0
  %v663 = vsel %vm659, %v648, 0.0
  %v664 = vsel %vm660, %v652, 0.0
  %v665 = vsel %vm659, %v649, 0.0
  %v666 = vsel %vm660, %v653, 0.0
  %v667 = vsel %vm659, %v650, 0.0
  %v668 = vsel %vm660, %v654, 0.0
  %669 = vst [vmem:[#allocation2 + $0x340] sm:$0xff] %v661
  %670 = vst [vmem:[#allocation2 + $0x348] sm:$0xff] %v662
  %671 = vst [vmem:[#allocation2 + $0x350] sm:$0xff] %v663
  %672 = vst [vmem:[#allocation2 + $0x358] sm:$0xff] %v664
  %673 = vst [vmem:[#allocation2 + $0x360] sm:$0xff] %v665
  %674 = vst [vmem:[#allocation2 + $0x368] sm:$0xff] %v666
  %675 = vst [vmem:[#allocation2 + $0x370] sm:$0xff] %v667
  %676 = vst [vmem:[#allocation2 + $0x378] sm:$0xff] %v668
  %677 = vrot.lane.b32.xlu0 %v22, 122
  %v678 = vpop.permute.xlu0 %677
  %679 = vrot.lane.b32.xlu0 %v23, 122
  %v680 = vpop.permute.xlu0 %679
  %681 = vrot.lane.b32.xlu0 %v24, 122
  %v682 = vpop.permute.xlu0 %681
  %683 = vrot.lane.b32.xlu0 %v25, 122
  %v684 = vpop.permute.xlu0 %683
  %685 = vrot.lane.b32.xlu0 %v27, 122
  %v686 = vpop.permute.xlu0 %685
  %687 = vrot.lane.b32.xlu0 %v28, 122
  %v688 = vpop.permute.xlu0 %687
  %689 = vrot.lane.b32.xlu0 %v29, 122
  %v690 = vpop.permute.xlu0 %689
  %691 = vrot.lane.b32.xlu0 %v30, 122
  %v692 = vpop.permute.xlu0 %691
  %vm693 = vcmp.lt.s32.totalorder %v32, 122
  %v694 = vsel %vm693, %v678, %v686
  %v695 = vsel %vm693, %v680, %v688
  %v696 = vsel %vm693, %v682, %v690
  %v697 = vsel %vm693, %v684, %v692
  %v698 = vsel %vm693, %v686, %v678
  %v699 = vsel %vm693, %v688, %v680
  %v700 = vsel %vm693, %v690, %v682
  %v701 = vsel %vm693, %v692, %v684
  %vm702 = vcmp.lt.s32.totalorder %v56, 122
  %vm703 = vcmp.lt.s32.totalorder %v57, 122
  %v704 = vsel %vm702, 1, 0
  %v705 = vsel %vm703, 1, 0
  %vm706 = vcmp.eq.s32.totalorder %v704, 1
  %vm707 = vcmp.eq.s32.totalorder %v705, 1
  %v708 = vsel %vm706, %v694, 0.0
  %v709 = vsel %vm707, %v698, 0.0
  %v710 = vsel %vm706, %v695, 0.0
  %v711 = vsel %vm707, %v699, 0.0
  %v712 = vsel %vm706, %v696, 0.0
  %v713 = vsel %vm707, %v700, 0.0
  %v714 = vsel %vm706, %v697, 0.0
  %v715 = vsel %vm707, %v701, 0.0
  %716 = vst [vmem:[#allocation2 + $0x380] sm:$0xff] %v708
  %717 = vst [vmem:[#allocation2 + $0x388] sm:$0xff] %v709
  %718 = vst [vmem:[#allocation2 + $0x390] sm:$0xff] %v710
  %719 = vst [vmem:[#allocation2 + $0x398] sm:$0xff] %v711
  %720 = vst [vmem:[#allocation2 + $0x3a0] sm:$0xff] %v712
  %721 = vst [vmem:[#allocation2 + $0x3a8] sm:$0xff] %v713
  %722 = vst [vmem:[#allocation2 + $0x3b0] sm:$0xff] %v714
  %723 = vst [vmem:[#allocation2 + $0x3b8] sm:$0xff] %v715
  %724 = vrot.lane.b32.xlu0 %v22, 121
  %v725 = vpop.permute.xlu0 %724
  %726 = vrot.lane.b32.xlu0 %v23, 121
  %v727 = vpop.permute.xlu0 %726
  %728 = vrot.lane.b32.xlu0 %v24, 121
  %v729 = vpop.permute.xlu0 %728
  %730 = vrot.lane.b32.xlu0 %v25, 121
  %v731 = vpop.permute.xlu0 %730
  %732 = vrot.lane.b32.xlu0 %v27, 121
  %v733 = vpop.permute.xlu0 %732
  %734 = vrot.lane.b32.xlu0 %v28, 121
  %v735 = vpop.permute.xlu0 %734
  %736 = vrot.lane.b32.xlu0 %v29, 121
  %v737 = vpop.permute.xlu0 %736
  %738 = vrot.lane.b32.xlu0 %v30, 121
  %v739 = vpop.permute.xlu0 %738
  %vm740 = vcmp.lt.s32.totalorder %v32, 121
  %v741 = vsel %vm740, %v725, %v733
  %v742 = vsel %vm740, %v727, %v735
  %v743 = vsel %vm740, %v729, %v737
  %v744 = vsel %vm740, %v731, %v739
  %v745 = vsel %vm740, %v733, %v725
  %v746 = vsel %vm740, %v735, %v727
  %v747 = vsel %vm740, %v737, %v729
  %v748 = vsel %vm740, %v739, %v731
  %vm749 = vcmp.lt.s32.totalorder %v56, 121
  %vm750 = vcmp.lt.s32.totalorder %v57, 121
  %v751 = vsel %vm749, 1, 0
  %v752 = vsel %vm750, 1, 0
  %vm753 = vcmp.eq.s32.totalorder %v751, 1
  %vm754 = vcmp.eq.s32.totalorder %v752, 1
  %v755 = vsel %vm753, %v741, 0.0
  %v756 = vsel %vm754, %v745, 0.0
  %v757 = vsel %vm753, %v742, 0.0
  %v758 = vsel %vm754, %v746, 0.0
  %v759 = vsel %vm753, %v743, 0.0
  %v760 = vsel %vm754, %v747, 0.0
  %v761 = vsel %vm753, %v744, 0.0
  %v762 = vsel %vm754, %v748, 0.0
  %763 = vst [vmem:[#allocation2 + $0x3c0] sm:$0xff] %v755
  %764 = vst [vmem:[#allocation2 + $0x3c8] sm:$0xff] %v756
  %765 = vst [vmem:[#allocation2 + $0x3d0] sm:$0xff] %v757
  %766 = vst [vmem:[#allocation2 + $0x3d8] sm:$0xff] %v758
  %767 = vst [vmem:[#allocation2 + $0x3e0] sm:$0xff] %v759
  %768 = vst [vmem:[#allocation2 + $0x3e8] sm:$0xff] %v760
  %769 = vst [vmem:[#allocation2 + $0x3f0] sm:$0xff] %v761
  %770 = vst [vmem:[#allocation2 + $0x3f8] sm:$0xff] %v762
  %771 = vrot.lane.b32.xlu0 %v22, 120
  %v772 = vpop.permute.xlu0 %771
  %773 = vrot.lane.b32.xlu0 %v23, 120
  %v774 = vpop.permute.xlu0 %773
  %775 = vrot.lane.b32.xlu0 %v24, 120
  %v776 = vpop.permute.xlu0 %775
  %777 = vrot.lane.b32.xlu0 %v25, 120
  %v778 = vpop.permute.xlu0 %777
  %779 = vrot.lane.b32.xlu0 %v27, 120
  %v780 = vpop.permute.xlu0 %779
  %781 = vrot.lane.b32.xlu0 %v28, 120
  %v782 = vpop.permute.xlu0 %781
  %783 = vrot.lane.b32.xlu0 %v29, 120
  %v784 = vpop.permute.xlu0 %783
  %785 = vrot.lane.b32.xlu0 %v30, 120
  %v786 = vpop.permute.xlu0 %785
  %vm787 = vcmp.lt.s32.totalorder %v32, 120
  %v788 = vsel %vm787, %v772, %v780
  %v789 = vsel %vm787, %v774, %v782
  %v790 = vsel %vm787, %v776, %v784
  %v791 = vsel %vm787, %v778, %v786
  %v792 = vsel %vm787, %v780, %v772
  %v793 = vsel %vm787, %v782, %v774
  %v794 = vsel %vm787, %v784, %v776
  %v795 = vsel %vm787, %v786, %v778
  %vm796 = vcmp.lt.s32.totalorder %v56, 120
  %vm797 = vcmp.lt.s32.totalorder %v57, 120
  %v798 = vsel %vm796, 1, 0
  %v799 = vsel %vm797, 1, 0
  %vm800 = vcmp.eq.s32.totalorder %v798, 1
  %vm801 = vcmp.eq.s32.totalorder %v799, 1
  %v802 = vsel %vm800, %v788, 0.0
  %v803 = vsel %vm801, %v792, 0.0
  %v804 = vsel %vm800, %v789, 0.0
  %v805 = vsel %vm801, %v793, 0.0
  %v806 = vsel %vm800, %v790, 0.0
  %v807 = vsel %vm801, %v794, 0.0
  %v808 = vsel %vm800, %v791, 0.0
  %v809 = vsel %vm801, %v795, 0.0
  %810 = vst [vmem:[#allocation2 + $0x400] sm:$0xff] %v802
  %811 = vst [vmem:[#allocation2 + $0x408] sm:$0xff] %v803
  %812 = vst [vmem:[#allocation2 + $0x410] sm:$0xff] %v804
  %813 = vst [vmem:[#allocation2 + $0x418] sm:$0xff] %v805
  %814 = vst [vmem:[#allocation2 + $0x420] sm:$0xff] %v806
  %815 = vst [vmem:[#allocation2 + $0x428] sm:$0xff] %v807
  %816 = vst [vmem:[#allocation2 + $0x430] sm:$0xff] %v808
  %817 = vst [vmem:[#allocation2 + $0x438] sm:$0xff] %v809
  %v818 = vld [vmem:[%s1] sm:$0xff]
  %v819 = vld [vmem:[%s1 + $0x8] sm:$0xff]
  %v820 = vld [vmem:[%s1 + $0x10] sm:$0xff]
  %v821 = vld [vmem:[%s1 + $0x18] sm:$0xff]
  %v822 = vld [vmem:[%s1 + $0x20] sm:$0xff]
  %v823 = vld [vmem:[%s1 + $0x28] sm:$0xff]
  %v824 = vld [vmem:[%s1 + $0x30] sm:$0xff]
  %v825 = vld [vmem:[%s1 + $0x38] sm:$0xff]
  %v826 = vld [vmem:[%s1 + $0x40] sm:$0xff]
  %v827 = vld [vmem:[%s1 + $0x48] sm:$0xff]
  %v828 = vld [vmem:[%s1 + $0x50] sm:$0xff]
  %v829 = vld [vmem:[%s1 + $0x58] sm:$0xff]
  %v830 = vld [vmem:[%s1 + $0x60] sm:$0xff]
  %v831 = vld [vmem:[%s1 + $0x68] sm:$0xff]
  %v832 = vld [vmem:[%s1 + $0x70] sm:$0xff]
  %v833 = vld [vmem:[%s1 + $0x78] sm:$0xf]
  %v834 = vld [vmem:[%s1 + $0x80] sm:$0xf]
  %v835 = vld [vmem:[%s1 + $0x88] sm:$0xf]
  %v836 = vld [vmem:[%s1 + $0x90] sm:$0xf]
  %v837 = vld [vmem:[%s1 + $0x98] sm:$0xf]
  %v838 = vld [vmem:[#allocation2] sm:$0xff]
  %v839 = vld [vmem:[#allocation2 + $0x8] sm:$0xff]
  %v840 = vld [vmem:[#allocation2 + $0x10] sm:$0xff]
  %v841 = vld [vmem:[#allocation2 + $0x18] sm:$0xff]
  %v842 = vld [vmem:[#allocation2 + $0x20] sm:$0xff]
  %v843 = vld [vmem:[#allocation2 + $0x28] sm:$0xff]
  %v844 = vld [vmem:[#allocation2 + $0x30] sm:$0xff]
  %v845 = vld [vmem:[#allocation2 + $0x38] sm:$0xff]
  %v846 = vld [vmem:[#allocation2 + $0x40] sm:$0xff]
  %v847 = vld [vmem:[#allocation2 + $0x48] sm:$0xff]
  %v848 = vld [vmem:[#allocation2 + $0x50] sm:$0xff]
  %v849 = vld [vmem:[#allocation2 + $0x58] sm:$0xff]
  %v850 = vld [vmem:[#allocation2 + $0x60] sm:$0xff]
  %v851 = vld [vmem:[#allocation2 + $0x68] sm:$0xff]
  %v852 = vld [vmem:[#allocation2 + $0x70] sm:$0xff]
  %v853 = vld [vmem:[#allocation2 + $0x78] sm:$0xff]
  %v854 = vld [vmem:[#allocation2 + $0x80] sm:$0xff]
  %v855 = vld [vmem:[#allocation2 + $0x88] sm:$0xff]
  %v856 = vld [vmem:[#allocation2 + $0x90] sm:$0xff]
  %v857 = vld [vmem:[#allocation2 + $0x98] sm:$0xff]
  %v858 = vld [vmem:[#allocation2 + $0xa0] sm:$0xff]
  %v859 = vld [vmem:[#allocation2 + $0xa8] sm:$0xff]
  %v860 = vld [vmem:[#allocation2 + $0xb0] sm:$0xff]
  %v861 = vld [vmem:[#allocation2 + $0xb8] sm:$0xff]
  %v862 = vld [vmem:[#allocation2 + $0xc0] sm:$0xff]
  %v863 = vld [vmem:[#allocation2 + $0xc8] sm:$0xff]
  %v864 = vld [vmem:[#allocation2 + $0xd0] sm:$0xff]
  %v865 = vld [vmem:[#allocation2 + $0xd8] sm:$0xff]
  %v866 = vld [vmem:[#allocation2 + $0xe0] sm:$0xff]
  %v867 = vld [vmem:[#allocation2 + $0xe8] sm:$0xff]
  %v868 = vld [vmem:[#allocation2 + $0xf0] sm:$0xff]
  %v869 = vld [vmem:[#allocation2 + $0xf8] sm:$0xff]
  %v870 = vld [vmem:[#allocation2 + $0x100] sm:$0xff]
  %v871 = vld [vmem:[#allocation2 + $0x108] sm:$0xff]
  %v872 = vld [vmem:[#allocation2 + $0x110] sm:$0xff]
  %v873 = vld [vmem:[#allocation2 + $0x118] sm:$0xff]
  %v874 = vld [vmem:[#allocation2 + $0x120] sm:$0xff]
  %v875 = vld [vmem:[#allocation2 + $0x128] sm:$0xff]
  %v876 = vld [vmem:[#allocation2 + $0x130] sm:$0xff]
  %v877 = vld [vmem:[#allocation2 + $0x138] sm:$0xff]
  %v878 = vld [vmem:[#allocation2 + $0x140] sm:$0xff]
  %v879 = vld [vmem:[#allocation2 + $0x148] sm:$0xff]
  %v880 = vld [vmem:[#allocation2 + $0x150] sm:$0xff]
  %v881 = vld [vmem:[#allocation2 + $0x158] sm:$0xff]
  %v882 = vld [vmem:[#allocation2 + $0x160] sm:$0xff]
  %v883 = vld [vmem:[#allocation2 + $0x168] sm:$0xff]
  %v884 = vld [vmem:[#allocation2 + $0x170] sm:$0xff]
  %v885 = vld [vmem:[#allocation2 + $0x178] sm:$0xff]
  %v886 = vld [vmem:[#allocation2 + $0x180] sm:$0xff]
  %v887 = vld [vmem:[#allocation2 + $0x188] sm:$0xff]
  %v888 = vld [vmem:[#allocation2 + $0x190] sm:$0xff]
  %v889 = vld [vmem:[#allocation2 + $0x198] sm:$0xff]
  %v890 = vld [vmem:[#allocation2 + $0x1a0] sm:$0xff]
  %v891 = vld [vmem:[#allocation2 + $0x1a8] sm:$0xff]
  %v892 = vld [vmem:[#allocation2 + $0x1b0] sm:$0xff]
  %v893 = vld [vmem:[#allocation2 + $0x1b8] sm:$0xff]
  %v894 = vld [vmem:[#allocation2 + $0x1c0] sm:$0xff]
  %v895 = vld [vmem:[#allocation2 + $0x1c8] sm:$0xff]
  %v896 = vld [vmem:[#allocation2 + $0x1d0] sm:$0xff]
  %v897 = vld [vmem:[#allocation2 + $0x1d8] sm:$0xff]
  %v898 = vld [vmem:[#allocation2 + $0x1e0] sm:$0xff]
  %v899 = vld [vmem:[#allocation2 + $0x1e8] sm:$0xff]
  %v900 = vld [vmem:[#allocation2 + $0x1f0] sm:$0xff]
  %v901 = vld [vmem:[#allocation2 + $0x1f8] sm:$0xff]
  %v902 = vld [vmem:[#allocation2 + $0x200] sm:$0xff]
  %v903 = vld [vmem:[#allocation2 + $0x208] sm:$0xff]
  %v904 = vld [vmem:[#allocation2 + $0x210] sm:$0xff]
  %v905 = vld [vmem:[#allocation2 + $0x218] sm:$0xff]
  %v906 = vld [vmem:[#allocation2 + $0x220] sm:$0xff]
  %v907 = vld [vmem:[#allocation2 + $0x228] sm:$0xff]
  %v908 = vld [vmem:[#allocation2 + $0x230] sm:$0xff]
  %v909 = vld [vmem:[#allocation2 + $0x238] sm:$0xff]
  %v910 = vld [vmem:[#allocation2 + $0x240] sm:$0xff]
  %v911 = vld [vmem:[#allocation2 + $0x248] sm:$0xff]
  %v912 = vld [vmem:[#allocation2 + $0x250] sm:$0xff]
  %v913 = vld [vmem:[#allocation2 + $0x258] sm:$0xff]
  %v914 = vld [vmem:[#allocation2 + $0x260] sm:$0xff]
  %v915 = vld [vmem:[#allocation2 + $0x268] sm:$0xff]
  %v916 = vld [vmem:[#allocation2 + $0x270] sm:$0xff]
  %v917 = vld [vmem:[#allocation2 + $0x278] sm:$0xff]
  %v918 = vld [vmem:[#allocation2 + $0x280] sm:$0xff]
  %v919 = vld [vmem:[#allocation2 + $0x288] sm:$0xff]
  %v920 = vld [vmem:[#allocation2 + $0x290] sm:$0xff]
  %v921 = vld [vmem:[#allocation2 + $0x298] sm:$0xff]
  %v922 = vld [vmem:[#allocation2 + $0x2a0] sm:$0xff]
  %v923 = vld [vmem:[#allocation2 + $0x2a8] sm:$0xff]
  %v924 = vld [vmem:[#allocation2 + $0x2b0] sm:$0xff]
  %v925 = vld [vmem:[#allocation2 + $0x2b8] sm:$0xff]
  %v926 = vld [vmem:[#allocation2 + $0x2c0] sm:$0xff]
  %v927 = vld [vmem:[#allocation2 + $0x2c8] sm:$0xff]
  %v928 = vld [vmem:[#allocation2 + $0x2d0] sm:$0xff]
  %v929 = vld [vmem:[#allocation2 + $0x2d8] sm:$0xff]
  %v930 = vld [vmem:[#allocation2 + $0x2e0] sm:$0xff]
  %v931 = vld [vmem:[#allocation2 + $0x2e8] sm:$0xff]
  %v932 = vld [vmem:[#allocation2 + $0x2f0] sm:$0xff]
  %v933 = vld [vmem:[#allocation2 + $0x2f8] sm:$0xff]
  %v934 = vld [vmem:[#allocation2 + $0x300] sm:$0xff]
  %v935 = vld [vmem:[#allocation2 + $0x308] sm:$0xff]
  %v936 = vld [vmem:[#allocation2 + $0x310] sm:$0xff]
  %v937 = vld [vmem:[#allocation2 + $0x318] sm:$0xff]
  %v938 = vld [vmem:[#allocation2 + $0x320] sm:$0xff]
  %v939 = vld [vmem:[#allocation2 + $0x328] sm:$0xff]
  %v940 = vld [vmem:[#allocation2 + $0x330] sm:$0xff]
  %v941 = vld [vmem:[#allocation2 + $0x338] sm:$0xff]
  %v942 = vld [vmem:[#allocation2 + $0x340] sm:$0xff]
  %v943 = vld [vmem:[#allocation2 + $0x348] sm:$0xff]
  %v944 = vld [vmem:[#allocation2 + $0x350] sm:$0xff]
  %v945 = vld [vmem:[#allocation2 + $0x358] sm:$0xff]
  %v946 = vld [vmem:[#allocation2 + $0x360] sm:$0xff]
  %v947 = vld [vmem:[#allocation2 + $0x368] sm:$0xff]
  %v948 = vld [vmem:[#allocation2 + $0x370] sm:$0xff]
  %v949 = vld [vmem:[#allocation2 + $0x378] sm:$0xff]
  %v950 = vld [vmem:[#allocation2 + $0x380] sm:$0xff]
  %v951 = vld [vmem:[#allocation2 + $0x388] sm:$0xff]
  %v952 = vld [vmem:[#allocation2 + $0x390] sm:$0xff]
  %v953 = vld [vmem:[#allocation2 + $0x398] sm:$0xff]
  %v954 = vld [vmem:[#allocation2 + $0x3a0] sm:$0xff]
  %v955 = vld [vmem:[#allocation2 + $0x3a8] sm:$0xff]
  %v956 = vld [vmem:[#allocation2 + $0x3b0] sm:$0xff]
  %v957 = vld [vmem:[#allocation2 + $0x3b8] sm:$0xff]
  %v958 = vld [vmem:[#allocation2 + $0x3c0] sm:$0xff]
  %v959 = vld [vmem:[#allocation2 + $0x3c8] sm:$0xff]
  %v960 = vld [vmem:[#allocation2 + $0x3d0] sm:$0xff]
  %v961 = vld [vmem:[#allocation2 + $0x3d8] sm:$0xff]
  %v962 = vld [vmem:[#allocation2 + $0x3e0] sm:$0xff]
  %v963 = vld [vmem:[#allocation2 + $0x3e8] sm:$0xff]
  %v964 = vld [vmem:[#allocation2 + $0x3f0] sm:$0xff]
  %v965 = vld [vmem:[#allocation2 + $0x3f8] sm:$0xff]
  %v966 = vld [vmem:[#allocation2 + $0x400] sm:$0xff]
  %v967 = vld [vmem:[#allocation2 + $0x408] sm:$0xff]
  %v968 = vld [vmem:[#allocation2 + $0x410] sm:$0xff]
  %v969 = vld [vmem:[#allocation2 + $0x418] sm:$0xff]
  %v970 = vld [vmem:[#allocation2 + $0x420] sm:$0xff]
  %v971 = vld [vmem:[#allocation2 + $0x428] sm:$0xff]
  %v972 = vld [vmem:[#allocation2 + $0x430] sm:$0xff]
  %v973 = vld [vmem:[#allocation2 + $0x438] sm:$0xff]
  %v974 = vld [vmem:[%s2] sm:$0xff]
  %v975 = vld [vmem:[%s2 + $0x8] sm:$0xff]
  %v976 = vld [vmem:[%s2 + $0x10] sm:$0xff]
  %v977 = vld [vmem:[%s2 + $0x18] sm:$0xf]
  %979 = vset.pattern.permute.xlu0 0
  %980 = vperm.xlu0 %979, %v974
  %v981 = vpop.permute.xlu0 %980
  %984 = vset.pattern.permute.xlu0 0
  %985 = vperm.xlu0 %984, %v975
  %v986 = vpop.permute.xlu0 %985
  %989 = vset.pattern.permute.xlu0 0
  %990 = vperm.xlu0 %989, %v976
  %v991 = vpop.permute.xlu0 %990
  %994 = vset.pattern.permute.xlu0 0
  %995 = vperm.xlu0 %994, %v977
  %v996 = vpop.permute.xlu0 %995
  %vm998 = vcmask 261120
  %v1000 = vsel %vm998, %v822, 0
  %v1003 = vsel %vm998, %v827, 0
  %v1006 = vsel %vm998, %v832, 0
  %v1009 = vsel %vm998, %v837, 0
  %1011 = vmatprep.subr.mxu0 %v869
  %1012 = vmatpush1.msra.mxu0 %v868
  %1013 = vmatprep.subr.mxu0 %v867
  %1014 = vmatpush1.msra.mxu0 %v866
  %1015 = vmatprep.subr.mxu0 %v865
  %1016 = vmatpush1.msra.mxu0 %v864
  %1017 = vmatprep.subr.mxu0 %v863
  %1018 = vmatpush1.msra.mxu0 %v862
  %1019 = vmatprep.subr.mxu0 %v861
  %1020 = vmatpush1.msra.mxu0 %v860
  %1021 = vmatprep.subr.mxu0 %v859
  %1022 = vmatpush1.msra.mxu0 %v858
  %1023 = vmatprep.subr.mxu0 %v857
  %1024 = vmatpush1.msra.mxu0 %v856
  %1025 = vmatprep.subr.mxu0 %v855
  %1026 = vmatpush1.msra.mxu0 %v854
  %1027 = vmatprep.subr.mxu0 %v853
  %1028 = vmatpush1.msra.mxu0 %v852
  %1029 = vmatprep.subr.mxu0 %v851
  %1030 = vmatpush1.msra.mxu0 %v850
  %1031 = vmatprep.subr.mxu0 %v849
  %1032 = vmatpush1.msra.mxu0 %v848
  %1033 = vmatprep.subr.mxu0 %v847
  %1034 = vmatpush1.msra.mxu0 %v846
  %1035 = vmatprep.subr.mxu0 %v845
  %1036 = vmatpush1.msra.mxu0 %v844
  %1037 = vmatprep.subr.mxu0 %v843
  %1038 = vmatpush1.msra.mxu0 %v842
  %1039 = vmatprep.subr.mxu0 %v841
  %1040 = vmatpush1.msra.mxu0 %v840
  %1041 = vmatprep.subr.mxu0 %v839
  %1042 = vmatpush1.msra.mxu0 %v838
  %1043 = vmatprep.subr.mxu0 %v901
  %1044 = vmatpush2.msra.mxu0 %v900
  %1045 = vmatprep.subr.mxu0 %v899
  %1046 = vmatpush2.msra.mxu0 %v898
  %1047 = vmatprep.subr.mxu0 %v897
  %1048 = vmatpush2.msra.mxu0 %v896
  %1049 = vmatprep.subr.mxu0 %v895
  %1050 = vmatpush2.msra.mxu0 %v894
  %1051 = vmatprep.subr.mxu0 %v893
  %1052 = vmatpush2.msra.mxu0 %v892
  %1053 = vmatprep.subr.mxu0 %v891
  %1054 = vmatpush2.msra.mxu0 %v890
  %1055 = vmatprep.subr.mxu0 %v889
  %1056 = vmatpush2.msra.mxu0 %v888
  %1057 = vmatprep.subr.mxu0 %v887
  %1058 = vmatpush2.msra.mxu0 %v886
  %1059 = vmatprep.subr.mxu0 %v885
  %1060 = vmatpush2.msra.mxu0 %v884
  %1061 = vmatprep.subr.mxu0 %v883
  %1062 = vmatpush2.msra.mxu0 %v882
  %1063 = vmatprep.subr.mxu0 %v881
  %1064 = vmatpush2.msra.mxu0 %v880
  %1065 = vmatprep.subr.mxu0 %v879
  %1066 = vmatpush2.msra.mxu0 %v878
  %1067 = vmatprep.subr.mxu0 %v877
  %1068 = vmatpush2.msra.mxu0 %v876
  %1069 = vmatprep.subr.mxu0 %v875
  %1070 = vmatpush2.msra.mxu0 %v874
  %1071 = vmatprep.subr.mxu0 %v873
  %1072 = vmatpush2.msra.mxu0 %v872
  %1073 = vmatprep.subr.mxu0 %v871
  %1074 = vmatpush2.msra.mxu0 %v870
  %1075 = vmatprep.mubr.f32.mxu0 %v819
  %1076 = vmatmul.mubr.f32.gmra.mxu0 %v818
  %v1077 = vpop.f32.mrf.mxu0
  %v1078 = vadd.f32 %v981, %v1077
  %v1079 = vpop.f32.mrf.mxu0
  %v1080 = vadd.f32 %v981, %v1079
  %1081 = vmatprep.mubr.f32.mxu0 %v824
  %1082 = vmatmul.mubr.f32.gmra.mxu0 %v823
  %v1083 = vpop.f32.mrf.mxu0
  %v1084 = vadd.f32 %v986, %v1083
  %v1085 = vpop.f32.mrf.mxu0
  %v1086 = vadd.f32 %v986, %v1085
  %1087 = vmatprep.mubr.f32.mxu0 %v829
  %1088 = vmatmul.mubr.f32.gmra.mxu0 %v828
  %v1089 = vpop.f32.mrf.mxu0
  %v1090 = vadd.f32 %v991, %v1089
  %v1091 = vpop.f32.mrf.mxu0
  %v1092 = vadd.f32 %v991, %v1091
  %1093 = vmatprep.mubr.f32.mxu0 %v834
  %1094 = vmatmul.mubr.f32.gmra.mxu0 %v833
  %v1095 = vpop.f32.mrf.mxu0
  %v1096 = vadd.f32 %v996, %v1095
  %v1097 = vpop.f32.mrf.mxu0
  %v1098 = vadd.f32 %v996, %v1097
  %1099 = vdwg.mxu0
  %1100 = vmatprep.subr.mxu0 %v933
  %1101 = vmatpush1.msra.mxu0 %v932
  %1102 = vmatprep.subr.mxu0 %v931
  %1103 = vmatpush1.msra.mxu0 %v930
  %1104 = vmatprep.subr.mxu0 %v929
  %1105 = vmatpush1.msra.mxu0 %v928
  %1106 = vmatprep.subr.mxu0 %v927
  %1107 = vmatpush1.msra.mxu0 %v926
  %1108 = vmatprep.subr.mxu0 %v925
  %1109 = vmatpush1.msra.mxu0 %v924
  %1110 = vmatprep.subr.mxu0 %v923
  %1111 = vmatpush1.msra.mxu0 %v922
  %1112 = vmatprep.subr.mxu0 %v921
  %1113 = vmatpush1.msra.mxu0 %v920
  %1114 = vmatprep.subr.mxu0 %v919
  %1115 = vmatpush1.msra.mxu0 %v918
  %1116 = vmatprep.subr.mxu0 %v917
  %1117 = vmatpush1.msra.mxu0 %v916
  %1118 = vmatprep.subr.mxu0 %v915
  %1119 = vmatpush1.msra.mxu0 %v914
  %1120 = vmatprep.subr.mxu0 %v913
  %1121 = vmatpush1.msra.mxu0 %v912
  %1122 = vmatprep.subr.mxu0 %v911
  %1123 = vmatpush1.msra.mxu0 %v910
  %1124 = vmatprep.subr.mxu0 %v909
  %1125 = vmatpush1.msra.mxu0 %v908
  %1126 = vmatprep.subr.mxu0 %v907
  %1127 = vmatpush1.msra.mxu0 %v906
  %1128 = vmatprep.subr.mxu0 %v905
  %1129 = vmatpush1.msra.mxu0 %v904
  %1130 = vmatprep.subr.mxu0 %v903
  %1131 = vmatpush1.msra.mxu0 %v902
  %1132 = vmatprep.subr.mxu0 %v965
  %1133 = vmatpush2.msra.mxu0 %v964
  %1134 = vmatprep.subr.mxu0 %v963
  %1135 = vmatpush2.msra.mxu0 %v962
  %1136 = vmatprep.subr.mxu0 %v961
  %1137 = vmatpush2.msra.mxu0 %v960
  %1138 = vmatprep.subr.mxu0 %v959
  %1139 = vmatpush2.msra.mxu0 %v958
  %1140 = vmatprep.subr.mxu0 %v957
  %1141 = vmatpush2.msra.mxu0 %v956
  %1142 = vmatprep.subr.mxu0 %v955
  %1143 = vmatpush2.msra.mxu0 %v954
  %1144 = vmatprep.subr.mxu0 %v953
  %1145 = vmatpush2.msra.mxu0 %v952
  %1146 = vmatprep.subr.mxu0 %v951
  %1147 = vmatpush2.msra.mxu0 %v950
  %1148 = vmatprep.subr.mxu0 %v949
  %1149 = vmatpush2.msra.mxu0 %v948
  %1150 = vmatprep.subr.mxu0 %v947
  %1151 = vmatpush2.msra.mxu0 %v946
  %1152 = vmatprep.subr.mxu0 %v945
  %1153 = vmatpush2.msra.mxu0 %v944
  %1154 = vmatprep.subr.mxu0 %v943
  %1155 = vmatpush2.msra.mxu0 %v942
  %1156 = vmatprep.subr.mxu0 %v941
  %1157 = vmatpush2.msra.mxu0 %v940
  %1158 = vmatprep.subr.mxu0 %v939
  %1159 = vmatpush2.msra.mxu0 %v938
  %1160 = vmatprep.subr.mxu0 %v937
  %1161 = vmatpush2.msra.mxu0 %v936
  %1162 = vmatprep.subr.mxu0 %v935
  %1163 = vmatpush2.msra.mxu0 %v934
  %1164 = vmatprep.mubr.f32.mxu0 %v821
  %1165 = vmatmul.mubr.f32.gmra.mxu0 %v820
  %v1166 = vpop.f32.mrf.mxu0
  %v1167 = vadd.f32 %v1078, %v1166
  %v1168 = vpop.f32.mrf.mxu0
  %v1169 = vadd.f32 %v1080, %v1168
  %1170 = vmatprep.mubr.f32.mxu0 %v826
  %1171 = vmatmul.mubr.f32.gmra.mxu0 %v825
  %v1172 = vpop.f32.mrf.mxu0
  %v1173 = vadd.f32 %v1084, %v1172
  %v1174 = vpop.f32.mrf.mxu0
  %v1175 = vadd.f32 %v1086, %v1174
  %1176 = vmatprep.mubr.f32.mxu0 %v831
  %1177 = vmatmul.mubr.f32.gmra.mxu0 %v830
  %v1178 = vpop.f32.mrf.mxu0
  %v1179 = vadd.f32 %v1090, %v1178
  %v1180 = vpop.f32.mrf.mxu0
  %v1181 = vadd.f32 %v1092, %v1180
  %1182 = vmatprep.mubr.f32.mxu0 %v836
  %1183 = vmatmul.mubr.f32.gmra.mxu0 %v835
  %v1184 = vpop.f32.mrf.mxu0
  %v1185 = vadd.f32 %v1096, %v1184
  %v1186 = vpop.f32.mrf.mxu0
  %v1187 = vadd.f32 %v1098, %v1186
  %1188 = vdwg.mxu0
  %1189 = vmatprep.subr.mxu0 0.0
  %1190 = vmatpush1.msra.mxu0 0.0
  %1191 = vmatprep.subr.mxu0 0.0
  %1192 = vmatpush1.msra.mxu0 0.0
  %1193 = vmatprep.subr.mxu0 0.0
  %1194 = vmatpush1.msra.mxu0 0.0
  %1195 = vmatprep.subr.mxu0 0.0
  %1196 = vmatpush1.msra.mxu0 0.0
  %1197 = vmatprep.subr.mxu0 0.0
  %1198 = vmatpush1.msra.mxu0 0.0
  %1199 = vmatprep.subr.mxu0 0.0
  %1200 = vmatpush1.msra.mxu0 0.0
  %1201 = vmatprep.subr.mxu0 0.0
  %1202 = vmatpush1.msra.mxu0 0.0
  %1203 = vmatprep.subr.mxu0 0.0
  %1204 = vmatpush1.msra.mxu0 0.0
  %1205 = vmatprep.subr.mxu0 0.0
  %1206 = vmatpush1.msra.mxu0 0.0
  %1207 = vmatprep.subr.mxu0 0.0
  %1208 = vmatpush1.msra.mxu0 0.0
  %1209 = vmatprep.subr.mxu0 0.0
  %1210 = vmatpush1.msra.mxu0 0.0
  %1211 = vmatprep.subr.mxu0 0.0
  %1212 = vmatpush1.msra.mxu0 0.0
  %1213 = vmatprep.subr.mxu0 %v973
  %1214 = vmatpush1.msra.mxu0 %v972
  %1215 = vmatprep.subr.mxu0 %v971
  %1216 = vmatpush1.msra.mxu0 %v970
  %1217 = vmatprep.subr.mxu0 %v969
  %1218 = vmatpush1.msra.mxu0 %v968
  %1219 = vmatprep.subr.mxu0 %v967
  %1220 = vmatpush1.msra.mxu0 %v966
  %1221 = vmatprep.subr.mxu0 0.0
  %1222 = vmatpush2.msra.mxu0 0.0
  %1223 = vmatprep.subr.mxu0 0.0
  %1224 = vmatpush2.msra.mxu0 0.0
  %1225 = vmatprep.subr.mxu0 0.0
  %1226 = vmatpush2.msra.mxu0 0.0
  %1227 = vmatprep.subr.mxu0 0.0
  %1228 = vmatpush2.msra.mxu0 0.0
  %1229 = vmatprep.subr.mxu0 0.0
  %1230 = vmatpush2.msra.mxu0 0.0
  %1231 = vmatprep.subr.mxu0 0.0
  %1232 = vmatpush2.msra.mxu0 0.0
  %1233 = vmatprep.subr.mxu0 0.0
  %1234 = vmatpush2.msra.mxu0 0.0
  %1235 = vmatprep.subr.mxu0 0.0
  %1236 = vmatpush2.msra.mxu0 0.0
  %1237 = vmatprep.subr.mxu0 0.0
  %1238 = vmatpush2.msra.mxu0 0.0
  %1239 = vmatprep.subr.mxu0 0.0
  %1240 = vmatpush2.msra.mxu0 0.0
  %1241 = vmatprep.subr.mxu0 0.0
  %1242 = vmatpush2.msra.mxu0 0.0
  %1243 = vmatprep.subr.mxu0 0.0
  %1244 = vmatpush2.msra.mxu0 0.0
  %1245 = vmatprep.subr.mxu0 0.0
  %1246 = vmatpush2.msra.mxu0 0.0
  %1247 = vmatprep.subr.mxu0 0.0
  %1248 = vmatpush2.msra.mxu0 0.0
  %1249 = vmatprep.subr.mxu0 0.0
  %1250 = vmatpush2.msra.mxu0 0.0
  %1251 = vmatprep.subr.mxu0 0.0
  %1252 = vmatpush2.msra.mxu0 0.0
  %1253 = vmatprep.mubr.f32.mxu0 0.0
  %1254 = vmatmul.mubr.f32.gmra.mxu0 %v1000
  %v1255 = vpop.f32.mrf.mxu0
  %v1256 = vadd.f32 %v1167, %v1255
  %v1257 = vpop.f32.mrf.mxu0
  %v1258 = vadd.f32 %v1169, %v1257
  %1259 = vmatprep.mubr.f32.mxu0 0.0
  %1260 = vmatmul.mubr.f32.gmra.mxu0 %v1003
  %v1261 = vpop.f32.mrf.mxu0
  %v1262 = vadd.f32 %v1173, %v1261
  %v1263 = vpop.f32.mrf.mxu0
  %v1264 = vadd.f32 %v1175, %v1263
  %1265 = vmatprep.mubr.f32.mxu0 0.0
  %1266 = vmatmul.mubr.f32.gmra.mxu0 %v1006
  %v1267 = vpop.f32.mrf.mxu0
  %v1268 = vadd.f32 %v1179, %v1267
  %v1269 = vpop.f32.mrf.mxu0
  %v1270 = vadd.f32 %v1181, %v1269
  %1271 = vmatprep.mubr.f32.mxu0 0.0
  %1272 = vmatmul.mubr.f32.gmra.mxu0 %v1009
  %v1273 = vpop.f32.mrf.mxu0
  %v1274 = vadd.f32 %v1185, %v1273
  %v1275 = vpop.f32.mrf.mxu0
  %v1276 = vadd.f32 %v1187, %v1275
  %1277 = vdwg.mxu0
  %v1278 = vadd.f32 %v1256, %v1258
  %1279 = vadd.xlane.f32.xlu0 %v1278
  %v1280 = vpop.xlane.xlu0 %1279
  %v1281 = vadd.f32 %v1262, %v1264
  %1282 = vadd.xlane.f32.xlu0 %v1281
  %v1283 = vpop.xlane.xlu0 %1282
  %v1284 = vadd.f32 %v1268, %v1270
  %1285 = vadd.xlane.f32.xlu0 %v1284
  %v1286 = vpop.xlane.xlu0 %1285
  %vm1287 = vcmask 1043456
  %v1288 = vsel %vm1287, %v1274, 0.0
  %v1289 = vsel %vm1287, %v1276, 0.0
  %v1290 = vadd.f32 %v1288, %v1289
  %1291 = vadd.xlane.f32.xlu0 %v1290
  %v1292 = vpop.xlane.xlu0 %1291
  %v1293 = vrcp.pop 256.0
  %v1294 = vmul.f32 %v1280, %v1293
  %v1295 = vmul.f32 %v1283, %v1293
  %v1296 = vmul.f32 %v1286, %v1293
  %v1297 = vmul.f32 %v1292, %v1293
  %v1298 = vmul.f32 %v1256, %v1256
  %v1299 = vmul.f32 %v1258, %v1258
  %v1300 = vmul.f32 %v1262, %v1262
  %v1301 = vmul.f32 %v1264, %v1264
  %v1302 = vmul.f32 %v1268, %v1268
  %v1303 = vmul.f32 %v1270, %v1270
  %v1304 = vmul.f32 %v1274, %v1274
  %v1305 = vmul.f32 %v1276, %v1276
  %v1306 = vadd.f32 %v1298, %v1299
  %1307 = vadd.xlane.f32.xlu0 %v1306
  %v1308 = vpop.xlane.xlu0 %1307
  %v1309 = vadd.f32 %v1300, %v1301
  %1310 = vadd.xlane.f32.xlu0 %v1309
  %v1311 = vpop.xlane.xlu0 %1310
  %v1312 = vadd.f32 %v1302, %v1303
  %1313 = vadd.xlane.f32.xlu0 %v1312
  %v1314 = vpop.xlane.xlu0 %1313
  %v1315 = vsel %vm1287, %v1304, 0.0
  %v1316 = vsel %vm1287, %v1305, 0.0
  %v1317 = vadd.f32 %v1315, %v1316
  %1318 = vadd.xlane.f32.xlu0 %v1317
  %v1319 = vpop.xlane.xlu0 %1318
  %v1320 = vmul.f32 %v1308, %v1293
  %v1321 = vmul.f32 %v1311, %v1293
  %v1322 = vmul.f32 %v1314, %v1293
  %v1323 = vmul.f32 %v1319, %v1293
  %v1324 = vmul.f32 %v1294, %v1294
  %v1325 = vmul.f32 %v1295, %v1295
  %v1326 = vmul.f32 %v1296, %v1296
  %v1327 = vmul.f32 %v1297, %v1297
  %v1328 = vsub.f32 %v1320, %v1324
  %v1329 = vsub.f32 %v1321, %v1325
  %v1330 = vsub.f32 %v1322, %v1326
  %v1331 = vsub.f32 %v1323, %v1327
  %v1332 = vmax.f32 %v1328, 0.0
  %v1333 = vmax.f32 %v1329, 0.0
  %v1334 = vmax.f32 %v1330, 0.0
  %v1335 = vmax.f32 %v1331, 0.0
  %v1336 = vadd.f32 %v1332, 1e-05
  %v1337 = vadd.f32 %v1333, 1e-05
  %v1338 = vadd.f32 %v1334, 1e-05
  %v1339 = vadd.f32 %v1335, 1e-05
  %v1340 = vrsqrt.pop %v1336
  %v1341 = vrsqrt.pop %v1337
  %v1342 = vrsqrt.pop %v1338
  %v1343 = vrsqrt.pop %v1339
  %v1344 = vld [vmem:[%s3] sm:$0xff]
  %v1345 = vld [vmem:[%s3 + $0x8] sm:$0xff]
  %v1346 = vld [vmem:[%s3 + $0x10] sm:$0xff]
  %v1347 = vld [vmem:[%s3 + $0x18] sm:$0xf]
  %v1348 = vmul.f32 %v1340, %v1344
  %v1349 = vmul.f32 %v1341, %v1345
  %v1350 = vmul.f32 %v1342, %v1346
  %v1351 = vmul.f32 %v1343, %v1347
  %v1352 = vld [vmem:[%s4] sm:$0xff]
  %v1353 = vld [vmem:[%s4 + $0x8] sm:$0xff]
  %v1354 = vld [vmem:[%s4 + $0x10] sm:$0xff]
  %v1355 = vld [vmem:[%s4 + $0x18] sm:$0xf]
  %v1356 = vmul.f32 %v1294, %v1348
  %v1357 = vmul.f32 %v1295, %v1349
  %v1358 = vmul.f32 %v1296, %v1350
  %v1359 = vmul.f32 %v1297, %v1351
  %v1360 = vsub.f32 %v1352, %v1356
  %v1361 = vsub.f32 %v1353, %v1357
  %v1362 = vsub.f32 %v1354, %v1358
  %v1363 = vsub.f32 %v1355, %v1359
  %1365 = vset.pattern.permute.xlu0 0
  %1366 = vperm.xlu0 %1365, %v1348
  %v1367 = vpop.permute.xlu0 %1366
  %1370 = vset.pattern.permute.xlu0 0
  %1371 = vperm.xlu0 %1370, %v1349
  %v1372 = vpop.permute.xlu0 %1371
  %1375 = vset.pattern.permute.xlu0 0
  %1376 = vperm.xlu0 %1375, %v1350
  %v1377 = vpop.permute.xlu0 %1376
  %1380 = vset.pattern.permute.xlu0 0
  %1381 = vperm.xlu0 %1380, %v1351
  %v1382 = vpop.permute.xlu0 %1381
  %v1384 = vmul.f32 %v1256, %v1367
  %v1385 = vmul.f32 %v1258, %v1367
  %v1386 = vmul.f32 %v1262, %v1372
  %v1387 = vmul.f32 %v1264, %v1372
  %v1388 = vmul.f32 %v1268, %v1377
  %v1389 = vmul.f32 %v1270, %v1377
  %v1390 = vmul.f32 %v1274, %v1382
  %v1391 = vmul.f32 %v1276, %v1382
  %1393 = vset.pattern.permute.xlu0 0
  %1394 = vperm.xlu0 %1393, %v1360
  %v1395 = vpop.permute.xlu0 %1394
  %1398 = vset.pattern.permute.xlu0 0
  %1399 = vperm.xlu0 %1398, %v1361
  %v1400 = vpop.permute.xlu0 %1399
  %1403 = vset.pattern.permute.xlu0 0
  %1404 = vperm.xlu0 %1403, %v1362
  %v1405 = vpop.permute.xlu0 %1404
  %1408 = vset.pattern.permute.xlu0 0
  %1409 = vperm.xlu0 %1408, %v1363
  %v1410 = vpop.permute.xlu0 %1409
  %v1412 = vadd.f32 %v1384, %v1395
  %v1413 = vadd.f32 %v1385, %v1395
  %v1414 = vadd.f32 %v1386, %v1400
  %v1415 = vadd.f32 %v1387, %v1400
  %v1416 = vadd.f32 %v1388, %v1405
  %v1417 = vadd.f32 %v1389, %v1405
  %v1418 = vadd.f32 %v1390, %v1410
  %v1419 = vadd.f32 %v1391, %v1410
  %1420 = vst [vmem:[%s5] sm:$0xff] %v1256
  %1421 = vst [vmem:[%s5 + $0x8] sm:$0xff] %v1262
  %1422 = vst [vmem:[%s5 + $0x10] sm:$0xff] %v1268
  %1423 = vst [vmem:[%s5 + $0x18] sm:$0xf] %v1274
  %1424 = vst [vmem:[%s6] sm:$0xff] %v1412
  %1425 = vst [vmem:[%s6 + $0x8] sm:$0xff] %v1414
  %1426 = vst [vmem:[%s6 + $0x10] sm:$0xff] %v1416
  %1427 = vst [vmem:[%s6 + $0x18] sm:$0xf] %v1418
  %s1428 = scalar_lea.vmem %s5, 32
  %1429 = vst [vmem:[%s1428] sm:$0xff] %v1258
  %1430 = vst [vmem:[%s1428 + $0x8] sm:$0xff] %v1264
  %1431 = vst [vmem:[%s1428 + $0x10] sm:$0xff] %v1270
  %1432 = vst [vmem:[%s1428 + $0x18] sm:$0xf] %v1276
  %s1433 = scalar_lea.vmem %s6, 32
  %1434 = vst [vmem:[%s1433] sm:$0xff] %v1413
  %1435 = vst [vmem:[%s1433 + $0x8] sm:$0xff] %v1415
  %1436 = vst [vmem:[%s1433 + $0x10] sm:$0xff] %v1417
  %1437 = vst [vmem:[%s1433 + $0x18] sm:$0xf] %v1419
  // Predicated region
  $region22: #{mm_forward.1} parent=0 // pred_check
    _
  $region23: #{mm_forward.1} parent=0 // pred_check_branch
    %1439 = sbr.rel (0) target = $region25
  $region24: #{mm_forward.1} parent=0 // pred_region
    _
  $region25: #{mm_forward.1} parent=0 // pred_fallthru
    _
  // Predicated region
  $region26: #{mm_forward.1} parent=0 // pred_check
    _
  $region27: #{mm_forward.1} parent=0 // pred_check_branch
    %1441 = sbr.rel (0) target = $region29
  $region28: #{mm_forward.1} parent=0 // pred_region
    _
  $region29: #{mm_forward.1} parent=0 // pred_fallthru
    _
  // Predicated region
  $region30: #{mm_forward.1} parent=0 // pred_check
    _
  $region31: #{mm_forward.1} parent=0 // pred_check_branch
    %1443 = sbr.rel (0) target = $region33
  $region32: #{mm_forward.1} parent=0 // pred_region
    _
  $region33: #{mm_forward.1} parent=0 // pred_fallthru
    _
  // Predicated region
  $region34: #{mm_forward.1} parent=0 // pred_check
    _
  $region35: #{mm_forward.1} parent=0 // pred_check_branch
    %1445 = sbr.rel (0) target = $region37
  $region36: #{mm_forward.1} parent=0 // pred_region
    _
  $region37: #{mm_forward.1} parent=0 // pred_fallthru
    _

</llo_original>
